<compile_context>
chip_gen: v7x
topology: tpu7x:2x2x1
jax: 0.10.0
libtpu: 0.0.40
codegen_flags: <defaults>
</compile_context>

<pallas_src>
import functools

import jax
import jax.numpy as jnp
import numpy as np
from jax.experimental import pallas as pl
from jax.experimental.pallas import tpu as pltpu


def _round_up(x, m):
    return (x + m - 1) // m * m


def reshift_conv_kernel(tap_offsets, inv_count, cp,
                        x_ref, w_ref, m9_ref, bias_ref, o_ref,
                        s_ref, shift_ref, stack_ref):
    """Two-phase fused conv + per-channel mean shift.

    grid = (phase, image):
      phase 0: s[cin, t] += sum_q x_img[cin, q] * m9[q, t]      (batch tap sums)
      phase 1 (b == 0): shift = bias - inv_count * sum_t W_t @ s[:, t]
      phase 1: y = W_folded @ stacked_rolled_taps ; out = y + shift

    x_ref:    (1, Cp, Lseg)        this image's flattened padded activations
    w_ref:    (Cout, 9*Cp)         folded conv weight, tap-major / cin-minor
    m9_ref:   (Lseg, 9)            shifted valid-output masks (one per tap)
    bias_ref: (Cout, 1)            BatchShift2d bias (goal_mean), f32
    o_ref:    (1, Cout, Lseg)      this image's output slab
    s_ref:    (Cp, 9)   f32        scratch: accumulated per-tap channel sums
    shift_ref:(Cout, 1) f32        scratch: bias - batch mean
    stack_ref:(9*Cp, Lseg)         scratch: stacked rolled taps (conv K operand)
    """
    ph = pl.program_id(0)
    b = pl.program_id(1)
    n_taps = len(tap_offsets)

    @pl.when((ph == 0) & (b == 0))
    def _init():
        s_ref[...] = jnp.zeros_like(s_ref)

    @pl.when(ph == 0)
    def _partial_sums():
        # Masked per-tap / per-channel sums of this image (MXU, deep K, no rolls).
        s_ref[...] += jnp.dot(x_ref[0], m9_ref[...],
                              preferred_element_type=jnp.float32)

    @pl.when(ph == 1)
    def _conv_and_apply():
        @pl.when(b == 0)
        def _finalize_shift():
            # mean_c = inv_count * sum_{t, cin} W[c, t*cp + cin] * s[cin, t]
            mean = jnp.zeros(shift_ref.shape, jnp.float32)
            for t in range(n_taps):
                w_t = w_ref[:, t * cp:(t + 1) * cp].astype(jnp.float32)
                mean = mean + jnp.dot(w_t, s_ref[:, t:t + 1],
                                      preferred_element_type=jnp.float32)
            # Conv bias omitted on purpose: (y + b) - mean(y + b) == y - mean(y).
            shift_ref[...] = bias_ref[...] - mean * inv_count

        # 3x3 conv as ONE K = 9*Cp MXU matmul over in-kernel rolled taps.
        # Rolls run on an f32 copy (lossless for bf16 inputs); circular wrap only
        # touches lanes beyond the last valid output, which are sliced away.
        x = x_ref[0].astype(jnp.float32)
        lseg = x.shape[-1]
        for t, off in enumerate(tap_offsets):        # static 3x3 unroll
            # roll by (lseg - off)  <=>  rolled[q] = x[(q + off) mod lseg]
            rolled = x if off == 0 else pltpu.roll(x, shift=lseg - off, axis=1)
            stack_ref[t * cp:(t + 1) * cp, :] = rolled.astype(stack_ref.dtype)
        y = jnp.dot(w_ref[...], stack_ref[...],
                    preferred_element_type=jnp.float32)
        o_ref[0] = (y + shift_ref[...]).astype(o_ref.dtype)


def reshift_layer_forward(x_nchw, w_oihw, conv_bias, bn_bias, *,
                          compute_dtype=jnp.bfloat16, out_dtype=None):
    """ReshiftLayer forward. x_nchw: (B, Cin, H, W) -> (B, Cout, H, W)."""
    B, Cin, H, W = x_nchw.shape
    Cout, Cin2, KH, KW = w_oihw.shape
    assert Cin2 == Cin and KH == 3 and KW == 3, "wrapper assumes a 3x3 'same' conv"
    n_taps = KH * KW
    out_dtype = x_nchw.dtype if out_dtype is None else out_dtype

    Hp, Wp = H + 2, W + 2
    Lseg = _round_up(Hp * Wp, 128)          # per-image flat length, lane aligned
    Cp = _round_up(Cin, 8)                  # sublane-aligned channel count

    # --- layout prep: pads + reshape only (no transposes, no im2col) ---
    xp = jnp.pad(x_nchw, ((0, 0), (0, Cp - Cin), (1, 1), (1, 1)))      # (B,Cp,Hp,Wp)
    x3d = jnp.pad(xp.reshape(B, Cp, Hp * Wp),
                  ((0, 0), (0, 0), (0, Lseg - Hp * Wp)))               # (B,Cp,Lseg)
    x3d = x3d.astype(compute_dtype)

    # Conv weight folded into a single K = 9*Cp contraction (tap-major, cin-minor):
    #   w_folded[c, t*Cp + cin] = W[c, cin, kh, kw],  t = kh*3 + kw.
    wt = jnp.pad(w_oihw, ((0, 0), (0, Cp - Cin), (0, 0), (0, 0)))
    w_folded = jnp.transpose(wt, (0, 2, 3, 1)).reshape(Cout, n_taps * Cp)
    w_folded = w_folded.astype(compute_dtype)
    tap_offsets = tuple(kh * Wp + kw for kh in range(KH) for kw in range(KW))

    # Shifted valid-output masks: m9[q, t] = 1 iff (q - off_t) is a valid output
    # lane, so  x_img @ m9  yields the per-tap / per-channel sums feeding the
    # batch mean (sum_{valid p} x[p + off_t] == sum_q x[q] * m9[q, t]).
    q = np.arange(Lseg)
    m9 = np.zeros((Lseg, n_taps), np.float32)
    for t, off in enumerate(tap_offsets):
        p = q - off
        m9[:, t] = (p >= 0) & (p < H * Wp) & ((p % Wp) < W)
    mask9 = jnp.asarray(m9).astype(compute_dtype)

    del conv_bias  # cancels exactly in y - mean(y)

    csize = jnp.dtype(compute_dtype).itemsize
    osize = jnp.dtype(out_dtype).itemsize
    block_bytes = (2 * Cp * Lseg * csize                 # x block (double buffered)
                   + 2 * Cout * Lseg * osize             # out block
                   + Lseg * n_taps * csize               # mask9
                   + Cout * n_taps * Cp * csize          # folded weights
                   + Cout * 4                            # bias
                   + n_taps * Cp * Lseg * csize          # stacked-tap scratch
                   + (Cp * n_taps + Cout) * 4            # s / shift scratch
                   + 4 * Cp * Lseg * 4                   # f32 tile + roll temps
                   + 2 * Cout * Lseg * 4)                # f32 y temp
    vmem_limit = int(min(96 * 2**20, max(16 * 2**20, 2 * block_bytes)))

    flops = int(2 * B * Lseg * Cout * n_taps * Cp        # phase-1 conv
                + 2 * B * Lseg * Cp * n_taps)            # phase-0 mask matmul
    bytes_accessed = int(2 * x3d.size * csize            # x read in both phases
                         + B * Cout * Lseg * osize
                         + w_folded.size * csize + mask9.size * csize)

    kernel = functools.partial(reshift_conv_kernel, tap_offsets,
                               1.0 / float(B * H * W), Cp)

    out3d = pl.pallas_call(
        kernel,
        out_shape=jax.ShapeDtypeStruct((B, Cout, Lseg), out_dtype),
        grid_spec=pltpu.PrefetchScalarGridSpec(
            num_scalar_prefetch=0,
            grid=(2, B),                                  # (phase, image)
            in_specs=[
                pl.BlockSpec((1, Cp, Lseg), lambda ph, b: (b, 0, 0)),        # x
                pl.BlockSpec((Cout, n_taps * Cp), lambda ph, b: (0, 0)),     # W
                pl.BlockSpec((Lseg, n_taps), lambda ph, b: (0, 0)),          # masks
                pl.BlockSpec((Cout, 1), lambda ph, b: (0, 0)),               # bias
            ],
            # Phase 0 parks the (unwritten) output window on image 0; phase 1
            # writes it fully before it is ever flushed, so no garbage writebacks.
            out_specs=pl.BlockSpec((1, Cout, Lseg), lambda ph, b: (b * ph, 0, 0)),
            scratch_shapes=[
                pltpu.VMEM((Cp, n_taps), jnp.float32),          # tap channel sums
                pltpu.VMEM((Cout, 1), jnp.float32),             # shift = bias - mean
                pltpu.VMEM((n_taps * Cp, Lseg), compute_dtype), # stacked rolled taps
            ]),
        compiler_params=pltpu.CompilerParams(
            # Both axes are reductions / ordered phases -> "arbitrary".
            dimension_semantics=("arbitrary", "arbitrary"),
            vmem_limit_bytes=vmem_limit),
        cost_estimate=pl.CostEstimate(flops=flops, transcendentals=0,
                                      bytes_accessed=bytes_accessed),
    )(x3d, w_folded, mask9, bn_bias.reshape(Cout, 1).astype(jnp.float32))

    # Drop horizontal-padding / alignment lanes; already NCHW-ordered (no transpose).
    out = out3d[:, :, :H * Wp].reshape(B, Cout, H, Wp)[..., :W]
    return out


def reference_forward(x, w, b, bn_bias):
    """Pure-JAX reference mirroring the PyTorch module (training branch)."""
    y = jax.lax.conv_general_dilated(
        x, w, window_strides=(1, 1), padding="SAME",
        dimension_numbers=("NCHW", "OIHW", "NCHW"))
    y = y + b[None, :, None, None]
    mu = jnp.mean(y, axis=(0, 2, 3))
    return y - mu[None, :, None, None] + bn_bias[None, :, None, None]


if __name__ == "__main__":
    key = jax.random.PRNGKey(0)
    k_x, k_w, k_b, k_g = jax.random.split(key, 4)

    B, Cin, H, W = 2, 4, 16, 16
    Cout, KH, KW = 8, 3, 3

    x = jax.random.normal(k_x, (B, Cin, H, W), dtype=jnp.float32)
    conv_w = jax.random.normal(k_w, (Cout, Cin, KH, KW), dtype=jnp.float32) * 0.1
    conv_b = jax.random.normal(k_b, (Cout,), dtype=jnp.float32) * 0.1
    # BatchShift2d bias (goal_mean from set_stats); deterministic, non-trivial.
    bn_bias = jax.random.normal(k_g, (Cout,), dtype=jnp.float32) * 0.5

    ref = reference_forward(x, conv_w, conv_b, bn_bias)

    # Exact path (f32 activations) -> tight tolerance.
    out_f32 = jax.block_until_ready(
        reshift_layer_forward(x, conv_w, conv_b, bn_bias,
                              compute_dtype=jnp.float32))
    np.testing.assert_allclose(np.asarray(out_f32), np.asarray(ref),
                               rtol=1e-4, atol=1e-4)

    # Default path (bf16 activation storage, f32 accumulation) -> loose tolerance.
    out_bf16 = jax.block_until_ready(
        reshift_layer_forward(x, conv_w, conv_b, bn_bias))
    np.testing.assert_allclose(np.asarray(out_bf16), np.asarray(ref),
                               rtol=5e-2, atol=5e-2)

    print("KERNEL_OK")
</pallas_src>

<mosaic_0001>
module attributes {stable_mosaic.version = 11 : i64} {
  func.func @reshift_conv_kernel(%arg0: i32, %arg1: i32, %arg2: memref<1x8x384xf32, #tpu.memory_space<vmem>>, %arg3: memref<8x72xf32, #tpu.memory_space<vmem>>, %arg4: memref<384x9xf32, #tpu.memory_space<vmem>>, %arg5: memref<8x1xf32, #tpu.memory_space<vmem>>, %arg6: memref<1x8x384xf32, #tpu.memory_space<vmem>>, %arg7: memref<8x9xf32, #tpu.memory_space<vmem>>, %arg8: memref<8x1xf32, #tpu.memory_space<vmem>>, %arg9: memref<72x384xf32, #tpu.memory_space<vmem>>) attributes {dimension_semantics = [#tpu.dimension_semantics<arbitrary>, #tpu.dimension_semantics<arbitrary>], iteration_bounds = array<i64: 2, 2>, scalar_prefetch = 0 : i64, scratch_operands = 3 : i64, tpu.core_type = #tpu.core_type<tc>, window_params = [{transform_indices = @transform_0, window_bounds = array<i64: 1, 8, 384>}, {pipeline_mode = #tpu.pipeline_mode<synchronous>, transform_indices = @transform_1, window_bounds = array<i64: 8, 72>}, {pipeline_mode = #tpu.pipeline_mode<synchronous>, transform_indices = @transform_2, window_bounds = array<i64: 384, 9>}, {pipeline_mode = #tpu.pipeline_mode<synchronous>, transform_indices = @transform_3, window_bounds = array<i64: 8, 1>}, {transform_indices = @transform_4, window_bounds = array<i64: 1, 8, 384>}]} {
    %c0_i32 = arith.constant 0 : i32
    %0 = arith.cmpi eq, %arg0, %c0_i32 : i32
    %c0_i32_0 = arith.constant 0 : i32
    %1 = arith.cmpi eq, %arg1, %c0_i32_0 : i32
    %2 = arith.andi %0, %1 : i1
    %3 = arith.extui %2 : i1 to i32
    %c0_i32_1 = arith.constant 0 : i32
    %4 = arith.cmpi ne, %3, %c0_i32_1 : i32
    scf.if %4 {
      %cst = arith.constant 0.000000e+00 : f32
      %11 = vector.broadcast %cst : f32 to vector<8x9xf32>
      %c0 = arith.constant 0 : index
      %c0_5 = arith.constant 0 : index
      %12 = vector.load %arg7[%c0, %c0_5] : memref<8x9xf32, #tpu.memory_space<vmem>>, vector<8x9xf32>
      tpu.vector_store %arg7[%c0, %c0_5], %11 {strides = array<i32>} : memref<8x9xf32, #tpu.memory_space<vmem>>, vector<8x9xf32>,
    } else {
    }
    %c0_i32_2 = arith.constant 0 : i32
    %5 = arith.cmpi eq, %arg0, %c0_i32_2 : i32
    %6 = arith.extui %5 : i1 to i32
    %c0_i32_3 = arith.constant 0 : i32
    %7 = arith.cmpi ne, %6, %c0_i32_3 : i32
    scf.if %7 {
      %c0 = arith.constant 0 : index
      %c0_5 = arith.constant 0 : index
      %11 = vector.load %arg7[%c0, %c0_5] : memref<8x9xf32, #tpu.memory_space<vmem>>, vector<8x9xf32>
      %c0_6 = arith.constant 0 : index
      %c0_7 = arith.constant 0 : index
      %c0_8 = arith.constant 0 : index
      %12 = vector.load %arg2[%c0_6, %c0_7, %c0_8] : memref<1x8x384xf32, #tpu.memory_space<vmem>>, vector<1x8x384xf32>
      %13 = vector.shape_cast %12 : vector<1x8x384xf32> to vector<8x384xf32>
      %c0_9 = arith.constant 0 : index
      %c0_10 = arith.constant 0 : index
      %14 = vector.load %arg4[%c0_9, %c0_10] : memref<384x9xf32, #tpu.memory_space<vmem>>, vector<384x9xf32>
      %cst = arith.constant dense<0.000000e+00> : vector<8x9xf32>
      %15 = tpu.matmul %13, %14, %cst {dimension_numbers = #tpu.dot_dimension_numbers<[1], [0], [0], [1], [0, 0, 1, 1], [], []>} : vector<8x384xf32>, vector<384x9xf32>, vector<8x9xf32> -> vector<8x9xf32>
      %16 = arith.addf %11, %15 : vector<8x9xf32>
      %c0_11 = arith.constant 0 : index
      %c0_12 = arith.constant 0 : index
      %17 = vector.load %arg7[%c0_11, %c0_12] : memref<8x9xf32, #tpu.memory_space<vmem>>, vector<8x9xf32>
      tpu.vector_store %arg7[%c0_11, %c0_12], %16 {strides = array<i32>} : memref<8x9xf32, #tpu.memory_space<vmem>>, vector<8x9xf32>,
    } else {
    }
    %c1_i32 = arith.constant 1 : i32
    %8 = arith.cmpi eq, %arg0, %c1_i32 : i32
    %9 = arith.extui %8 : i1 to i32
    %c0_i32_4 = arith.constant 0 : i32
    %10 = arith.cmpi ne, %9, %c0_i32_4 : i32
    scf.if %10 {
      %c0_i32_5 = arith.constant 0 : i32
      %11 = arith.cmpi eq, %arg1, %c0_i32_5 : i32
      %12 = arith.extui %11 : i1 to i32
      %c0_i32_6 = arith.constant 0 : i32
      %13 = arith.cmpi ne, %12, %c0_i32_6 : i32
      scf.if %13 {
        %cst_28 = arith.constant 0.000000e+00 : f32
        %42 = vector.broadcast %cst_28 : f32 to vector<8x1xf32>
        %c0_29 = arith.constant 0 : index
        %c0_30 = arith.constant 0 : index
        %43 = vector.load %arg3[%c0_29, %c0_30] : memref<8x72xf32, #tpu.memory_space<vmem>>, vector<8x8xf32>
        %c0_31 = arith.constant 0 : index
        %c0_32 = arith.constant 0 : index
        %44 = vector.load %arg7[%c0_31, %c0_32] : memref<8x9xf32, #tpu.memory_space<vmem>>, vector<8x1xf32>
        %cst_33 = arith.constant dense<0.000000e+00> : vector<8x1xf32>
        %45 = tpu.matmul %43, %44, %cst_33 {dimension_numbers = #tpu.dot_dimension_numbers<[1], [0], [0], [1], [0, 0, 1, 1], [], []>} : vector<8x8xf32>, vector<8x1xf32>, vector<8x1xf32> -> vector<8x1xf32>
        %46 = arith.addf %42, %45 : vector<8x1xf32>
        %c0_34 = arith.constant 0 : index
        %c8_35 = arith.constant 8 : index
        %47 = vector.load %arg3[%c0_34, %c8_35] : memref<8x72xf32, #tpu.memory_space<vmem>>, vector<8x8xf32>
        %c0_36 = arith.constant 0 : index
        %c1 = arith.constant 1 : index
        %48 = vector.load %arg7[%c0_36, %c1] : memref<8x9xf32, #tpu.memory_space<vmem>>, vector<8x1xf32>
        %cst_37 = arith.constant dense<0.000000e+00> : vector<8x1xf32>
        %49 = tpu.matmul %47, %48, %cst_37 {dimension_numbers = #tpu.dot_dimension_numbers<[1], [0], [0], [1], [0, 0, 1, 1], [], []>} : vector<8x8xf32>, vector<8x1xf32>, vector<8x1xf32> -> vector<8x1xf32>
        %50 = arith.addf %46, %49 : vector<8x1xf32>
        %c0_38 = arith.constant 0 : index
        %c16_39 = arith.constant 16 : index
        %51 = vector.load %arg3[%c0_38, %c16_39] : memref<8x72xf32, #tpu.memory_space<vmem>>, vector<8x8xf32>
        %c0_40 = arith.constant 0 : index
        %c2 = arith.constant 2 : index
        %52 = vector.load %arg7[%c0_40, %c2] : memref<8x9xf32, #tpu.memory_space<vmem>>, vector<8x1xf32>
        %cst_41 = arith.constant dense<0.000000e+00> : vector<8x1xf32>
        %53 = tpu.matmul %51, %52, %cst_41 {dimension_numbers = #tpu.dot_dimension_numbers<[1], [0], [0], [1], [0, 0, 1, 1], [], []>} : vector<8x8xf32>, vector<8x1xf32>, vector<8x1xf32> -> vector<8x1xf32>
        %54 = arith.addf %50, %53 : vector<8x1xf32>
        %c0_42 = arith.constant 0 : index
        %c24_43 = arith.constant 24 : index
        %55 = vector.load %arg3[%c0_42, %c24_43] : memref<8x72xf32, #tpu.memory_space<vmem>>, vector<8x8xf32>
        %c0_44 = arith.constant 0 : index
        %c3 = arith.constant 3 : index
        %56 = vector.load %arg7[%c0_44, %c3] : memref<8x9xf32, #tpu.memory_space<vmem>>, vector<8x1xf32>
        %cst_45 = arith.constant dense<0.000000e+00> : vector<8x1xf32>
        %57 = tpu.matmul %55, %56, %cst_45 {dimension_numbers = #tpu.dot_dimension_numbers<[1], [0], [0], [1], [0, 0, 1, 1], [], []>} : vector<8x8xf32>, vector<8x1xf32>, vector<8x1xf32> -> vector<8x1xf32>
        %58 = arith.addf %54, %57 : vector<8x1xf32>
        %c0_46 = arith.constant 0 : index
        %c32_47 = arith.constant 32 : index
        %59 = vector.load %arg3[%c0_46, %c32_47] : memref<8x72xf32, #tpu.memory_space<vmem>>, vector<8x8xf32>
        %c0_48 = arith.constant 0 : index
        %c4 = arith.constant 4 : index
        %60 = vector.load %arg7[%c0_48, %c4] : memref<8x9xf32, #tpu.memory_space<vmem>>, vector<8x1xf32>
        %cst_49 = arith.constant dense<0.000000e+00> : vector<8x1xf32>
        %61 = tpu.matmul %59, %60, %cst_49 {dimension_numbers = #tpu.dot_dimension_numbers<[1], [0], [0], [1], [0, 0, 1, 1], [], []>} : vector<8x8xf32>, vector<8x1xf32>, vector<8x1xf32> -> vector<8x1xf32>
        %62 = arith.addf %58, %61 : vector<8x1xf32>
        %c0_50 = arith.constant 0 : index
        %c40_51 = arith.constant 40 : index
        %63 = vector.load %arg3[%c0_50, %c40_51] : memref<8x72xf32, #tpu.memory_space<vmem>>, vector<8x8xf32>
        %c0_52 = arith.constant 0 : index
        %c5 = arith.constant 5 : index
        %64 = vector.load %arg7[%c0_52, %c5] : memref<8x9xf32, #tpu.memory_space<vmem>>, vector<8x1xf32>
        %cst_53 = arith.constant dense<0.000000e+00> : vector<8x1xf32>
        %65 = tpu.matmul %63, %64, %cst_53 {dimension_numbers = #tpu.dot_dimension_numbers<[1], [0], [0], [1], [0, 0, 1, 1], [], []>} : vector<8x8xf32>, vector<8x1xf32>, vector<8x1xf32> -> vector<8x1xf32>
        %66 = arith.addf %62, %65 : vector<8x1xf32>
        %c0_54 = arith.constant 0 : index
        %c48_55 = arith.constant 48 : index
        %67 = vector.load %arg3[%c0_54, %c48_55] : memref<8x72xf32, #tpu.memory_space<vmem>>, vector<8x8xf32>
        %c0_56 = arith.constant 0 : index
        %c6 = arith.constant 6 : index
        %68 = vector.load %arg7[%c0_56, %c6] : memref<8x9xf32, #tpu.memory_space<vmem>>, vector<8x1xf32>
        %cst_57 = arith.constant dense<0.000000e+00> : vector<8x1xf32>
        %69 = tpu.matmul %67, %68, %cst_57 {dimension_numbers = #tpu.dot_dimension_numbers<[1], [0], [0], [1], [0, 0, 1, 1], [], []>} : vector<8x8xf32>, vector<8x1xf32>, vector<8x1xf32> -> vector<8x1xf32>
        %70 = arith.addf %66, %69 : vector<8x1xf32>
        %c0_58 = arith.constant 0 : index
        %c56_59 = arith.constant 56 : index
        %71 = vector.load %arg3[%c0_58, %c56_59] : memref<8x72xf32, #tpu.memory_space<vmem>>, vector<8x8xf32>
        %c0_60 = arith.constant 0 : index
        %c7 = arith.constant 7 : index
        %72 = vector.load %arg7[%c0_60, %c7] : memref<8x9xf32, #tpu.memory_space<vmem>>, vector<8x1xf32>
        %cst_61 = arith.constant dense<0.000000e+00> : vector<8x1xf32>
        %73 = tpu.matmul %71, %72, %cst_61 {dimension_numbers = #tpu.dot_dimension_numbers<[1], [0], [0], [1], [0, 0, 1, 1], [], []>} : vector<8x8xf32>, vector<8x1xf32>, vector<8x1xf32> -> vector<8x1xf32>
        %74 = arith.addf %70, %73 : vector<8x1xf32>
        %c0_62 = arith.constant 0 : index
        %c64_63 = arith.constant 64 : index
        %75 = vector.load %arg3[%c0_62, %c64_63] : memref<8x72xf32, #tpu.memory_space<vmem>>, vector<8x8xf32>
        %c0_64 = arith.constant 0 : index
        %c8_65 = arith.constant 8 : index
        %76 = vector.load %arg7[%c0_64, %c8_65] : memref<8x9xf32, #tpu.memory_space<vmem>>, vector<8x1xf32>
        %cst_66 = arith.constant dense<0.000000e+00> : vector<8x1xf32>
        %77 = tpu.matmul %75, %76, %cst_66 {dimension_numbers = #tpu.dot_dimension_numbers<[1], [0], [0], [1], [0, 0, 1, 1], [], []>} : vector<8x8xf32>, vector<8x1xf32>, vector<8x1xf32> -> vector<8x1xf32>
        %78 = arith.addf %74, %77 : vector<8x1xf32>
        %c0_67 = arith.constant 0 : index
        %c0_68 = arith.constant 0 : index
        %79 = vector.load %arg5[%c0_67, %c0_68] : memref<8x1xf32, #tpu.memory_space<vmem>>, vector<8x1xf32>
        %cst_69 = arith.constant 0.001953125 : f32
        %80 = vector.broadcast %cst_69 : f32 to vector<8x1xf32>
        %81 = arith.mulf %78, %80 : vector<8x1xf32>
        %82 = arith.subf %79, %81 : vector<8x1xf32>
        %c0_70 = arith.constant 0 : index
        %c0_71 = arith.constant 0 : index
        %83 = vector.load %arg8[%c0_70, %c0_71] : memref<8x1xf32, #tpu.memory_space<vmem>>, vector<8x1xf32>
        tpu.vector_store %arg8[%c0_70, %c0_71], %82 {strides = array<i32>} : memref<8x1xf32, #tpu.memory_space<vmem>>, vector<8x1xf32>,
      } else {
      }
      %c0 = arith.constant 0 : index
      %c0_7 = arith.constant 0 : index
      %c0_8 = arith.constant 0 : index
      %14 = vector.load %arg2[%c0, %c0_7, %c0_8] : memref<1x8x384xf32, #tpu.memory_space<vmem>>, vector<1x8x384xf32>
      %15 = vector.shape_cast %14 : vector<1x8x384xf32> to vector<8x384xf32>
      %c0_9 = arith.constant 0 : index
      %c0_10 = arith.constant 0 : index
      %16 = vector.load %arg9[%c0_9, %c0_10] : memref<72x384xf32, #tpu.memory_space<vmem>>, vector<8x384xf32>
      tpu.vector_store %arg9[%c0_9, %c0_10], %15 {strides = array<i32>} : memref<72x384xf32, #tpu.memory_space<vmem>>, vector<8x384xf32>,
      %c383_i32 = arith.constant 383 : i32
      %17 = tpu.dynamic_rotate %15 by %c383_i32 dim 1 : vector<8x384xf32>, i32 -> vector<8x384xf32>
      %c8 = arith.constant 8 : index
      %c0_11 = arith.constant 0 : index
      %18 = vector.load %arg9[%c8, %c0_11] : memref<72x384xf32, #tpu.memory_space<vmem>>, vector<8x384xf32>
      tpu.vector_store %arg9[%c8, %c0_11], %17 {strides = array<i32>} : memref<72x384xf32, #tpu.memory_space<vmem>>, vector<8x384xf32>,
      %c382_i32 = arith.constant 382 : i32
      %19 = tpu.dynamic_rotate %15 by %c382_i32 dim 1 : vector<8x384xf32>, i32 -> vector<8x384xf32>
      %c16 = arith.constant 16 : index
      %c0_12 = arith.constant 0 : index
      %20 = vector.load %arg9[%c16, %c0_12] : memref<72x384xf32, #tpu.memory_space<vmem>>, vector<8x384xf32>
      tpu.vector_store %arg9[%c16, %c0_12], %19 {strides = array<i32>} : memref<72x384xf32, #tpu.memory_space<vmem>>, vector<8x384xf32>,
      %c366_i32 = arith.constant 366 : i32
      %21 = tpu.dynamic_rotate %15 by %c366_i32 dim 1 : vector<8x384xf32>, i32 -> vector<8x384xf32>
      %c24 = arith.constant 24 : index
      %c0_13 = arith.constant 0 : index
      %22 = vector.load %arg9[%c24, %c0_13] : memref<72x384xf32, #tpu.memory_space<vmem>>, vector<8x384xf32>
      tpu.vector_store %arg9[%c24, %c0_13], %21 {strides = array<i32>} : memref<72x384xf32, #tpu.memory_space<vmem>>, vector<8x384xf32>,
      %c365_i32 = arith.constant 365 : i32
      %23 = tpu.dynamic_rotate %15 by %c365_i32 dim 1 : vector<8x384xf32>, i32 -> vector<8x384xf32>
      %c32 = arith.constant 32 : index
      %c0_14 = arith.constant 0 : index
      %24 = vector.load %arg9[%c32, %c0_14] : memref<72x384xf32, #tpu.memory_space<vmem>>, vector<8x384xf32>
      tpu.vector_store %arg9[%c32, %c0_14], %23 {strides = array<i32>} : memref<72x384xf32, #tpu.memory_space<vmem>>, vector<8x384xf32>,
      %c364_i32 = arith.constant 364 : i32
      %25 = tpu.dynamic_rotate %15 by %c364_i32 dim 1 : vector<8x384xf32>, i32 -> vector<8x384xf32>
      %c40 = arith.constant 40 : index
      %c0_15 = arith.constant 0 : index
      %26 = vector.load %arg9[%c40, %c0_15] : memref<72x384xf32, #tpu.memory_space<vmem>>, vector<8x384xf32>
      tpu.vector_store %arg9[%c40, %c0_15], %25 {strides = array<i32>} : memref<72x384xf32, #tpu.memory_space<vmem>>, vector<8x384xf32>,
      %c348_i32 = arith.constant 348 : i32
      %27 = tpu.dynamic_rotate %15 by %c348_i32 dim 1 : vector<8x384xf32>, i32 -> vector<8x384xf32>
      %c48 = arith.constant 48 : index
      %c0_16 = arith.constant 0 : index
      %28 = vector.load %arg9[%c48, %c0_16] : memref<72x384xf32, #tpu.memory_space<vmem>>, vector<8x384xf32>
      tpu.vector_store %arg9[%c48, %c0_16], %27 {strides = array<i32>} : memref<72x384xf32, #tpu.memory_space<vmem>>, vector<8x384xf32>,
      %c347_i32 = arith.constant 347 : i32
      %29 = tpu.dynamic_rotate %15 by %c347_i32 dim 1 : vector<8x384xf32>, i32 -> vector<8x384xf32>
      %c56 = arith.constant 56 : index
      %c0_17 = arith.constant 0 : index
      %30 = vector.load %arg9[%c56, %c0_17] : memref<72x384xf32, #tpu.memory_space<vmem>>, vector<8x384xf32>
      tpu.vector_store %arg9[%c56, %c0_17], %29 {strides = array<i32>} : memref<72x384xf32, #tpu.memory_space<vmem>>, vector<8x384xf32>,
      %c346_i32 = arith.constant 346 : i32
      %31 = tpu.dynamic_rotate %15 by %c346_i32 dim 1 : vector<8x384xf32>, i32 -> vector<8x384xf32>
      %c64 = arith.constant 64 : index
      %c0_18 = arith.constant 0 : index
      %32 = vector.load %arg9[%c64, %c0_18] : memref<72x384xf32, #tpu.memory_space<vmem>>, vector<8x384xf32>
      tpu.vector_store %arg9[%c64, %c0_18], %31 {strides = array<i32>} : memref<72x384xf32, #tpu.memory_space<vmem>>, vector<8x384xf32>,
      %c0_19 = arith.constant 0 : index
      %c0_20 = arith.constant 0 : index
      %33 = vector.load %arg3[%c0_19, %c0_20] : memref<8x72xf32, #tpu.memory_space<vmem>>, vector<8x72xf32>
      %c0_21 = arith.constant 0 : index
      %c0_22 = arith.constant 0 : index
      %34 = vector.load %arg9[%c0_21, %c0_22] : memref<72x384xf32, #tpu.memory_space<vmem>>, vector<72x384xf32>
      %cst = arith.constant dense<0.000000e+00> : vector<8x384xf32>
      %35 = tpu.matmul %33, %34, %cst {dimension_numbers = #tpu.dot_dimension_numbers<[1], [0], [0], [1], [0, 0, 1, 1], [], []>} : vector<8x72xf32>, vector<72x384xf32>, vector<8x384xf32> -> vector<8x384xf32>
      %c0_23 = arith.constant 0 : index
      %c0_24 = arith.constant 0 : index
      %36 = vector.load %arg8[%c0_23, %c0_24] : memref<8x1xf32, #tpu.memory_space<vmem>>, vector<8x1xf32>
      %37 = vector.broadcast %36 : vector<8x1xf32> to vector<8x384xf32>
      %38 = arith.addf %35, %37 : vector<8x384xf32>
      %c0_25 = arith.constant 0 : index
      %c0_26 = arith.constant 0 : index
      %c0_27 = arith.constant 0 : index
      %39 = vector.load %arg6[%c0_25, %c0_26, %c0_27] : memref<1x8x384xf32, #tpu.memory_space<vmem>>, vector<1x8x384xf32>
      %40 = vector.shape_cast %39 : vector<1x8x384xf32> to vector<8x384xf32>
      %41 = vector.shape_cast %38 : vector<8x384xf32> to vector<1x8x384xf32>
      tpu.vector_store %arg6[%c0_25, %c0_26, %c0_27], %41 {strides = array<i32>} : memref<1x8x384xf32, #tpu.memory_space<vmem>>, vector<1x8x384xf32>,
    } else {
    }
    return
  }
  func.func @transform_0(%arg0: i32, %arg1: i32) -> (i32, i32, i32) {
    %c0_i32 = arith.constant 0 : i32
    %c0_i32_0 = arith.constant 0 : i32
    %c0_i32_1 = arith.constant 0 : i32
    return %arg1, %c0_i32, %c0_i32_0 : i32, i32, i32
  }
  func.func @transform_1(%arg0: i32, %arg1: i32) -> (i32, i32) {
    %c0_i32 = arith.constant 0 : i32
    %c0_i32_0 = arith.constant 0 : i32
    %c0_i32_1 = arith.constant 0 : i32
    return %c0_i32, %c0_i32_0 : i32, i32
  }
  func.func @transform_2(%arg0: i32, %arg1: i32) -> (i32, i32) {
    %c0_i32 = arith.constant 0 : i32
    %c0_i32_0 = arith.constant 0 : i32
    %c0_i32_1 = arith.constant 0 : i32
    return %c0_i32, %c0_i32_0 : i32, i32
  }
  func.func @transform_3(%arg0: i32, %arg1: i32) -> (i32, i32) {
    %c0_i32 = arith.constant 0 : i32
    %c0_i32_0 = arith.constant 0 : i32
    %c0_i32_1 = arith.constant 0 : i32
    return %c0_i32, %c0_i32_0 : i32, i32
  }
  func.func @transform_4(%arg0: i32, %arg1: i32) -> (i32, i32, i32) {
    %0 = arith.muli %arg1, %arg0 : i32
    %c0_i32 = arith.constant 0 : i32
    %c0_i32_0 = arith.constant 0 : i32
    %c0_i32_1 = arith.constant 0 : i32
    return %0, %c0_i32, %c0_i32_0 : i32, i32, i32
  }
}

</mosaic_0001>

<llo_original>
// kernel: tpu_custom_call.1
$region0: #{tpu_custom_call.1}
  #allocation0 [shape = 'u32[]', space=smem, size = 0x4, offset = 0x4, fixed_abs, tag = 'smem constant byte address 0x4 - core index']
  #allocation1 [shape = 'u32[144,128]{1,0:T(1,128)}', space=vmem, size = 0x12000, scoped, tag = 'internal scratch']
  #allocation2 [shape = 'f32[8,9]{1,0:T(8,128)}', space=vmem, size = 0x1000, scoped, tag = 'scratch operand']
  #allocation3 [shape = 'f32[8,1]{1,0:T(8,128)}', space=vmem, size = 0x1000, scoped, tag = 'scratch operand']
  #allocation4 [shape = 'f32[72,384]{1,0:T(8,128)}', space=vmem, size = 0x1b000, scoped, tag = 'scratch operand']
  %s0 = inlined_call_operand.vmem [shape: f32[2,8,384], index: 0, kind: input, shape index: {}]
  %s1 = inlined_call_operand.vmem [shape: f32[8,72], index: 1, kind: input, shape index: {}]
  %s2 = inlined_call_operand.vmem [shape: f32[384,9], index: 2, kind: input, shape index: {}]
  %s3 = inlined_call_operand.vmem [shape: f32[8,1], index: 3, kind: input, shape index: {}]
  %s4 = inlined_call_operand.hbm [shape: f32[2,8,384], index: 4, kind: output, shape index: {}]
  %s5 = sld [smem:[#allocation0]]
  $region65: #{tpu_custom_call.1} parent=0
    _
  %s7 = ssub.s32 1, %s5
  %s8 = scalar_select 0, %s7, %s5
  $region1: #{tpu_custom_call.1} parent=0
    #allocation5 [shape = 'u8[24576]{0}', space=vmem, size = 0x6000, scoped, tag = 'output window, operand 0']
    #allocation6 [shape = 's32[2]{0}', space=sflag, size = 0x8, scoped, tag = 'scoped memory for tpu_custom_call.1']
    %9 = vsyncpa [#allocation6], 0
    %s10 = scalar_lea.sflag [#allocation6], 1
    %11 = vsyncpa %s10, 0
    loop: start=0, step=1, limit=6
    $region2: #{tpu_custom_call.1} parent=1 // loop_pre_header
      _
    $region3: #{tpu_custom_call.1} parent=1 // loop_header
      %s13 = sphi 0, %s17
      %p14 = scmp.ge.s32.totalorder %s13, 6
      %s20 = sphi 0, %s32
      %s21 = sphi 0, %s28
      %s22 = sphi 0, %s20
      %s23 = sphi 0, %s21
      %s24 = sphi 0, %s22
      %s25 = sphi 0, %s23
      %s35 = sphi 0, %s37
      %s38 = sphi 0, %s35
      %s39 = sphi 0, %s38
      %s55 = sphi 0, %s39
      %s59 = sphi 0, %s59
      %s61 = sphi 0, %s59
      %s62 = sphi 0, %s61
      %s76 = sphi 0, %s62
      %s80 = sphi 0, %s80
      %s82 = sphi 0, %s80
      %s83 = sphi 0, %s82
      %s97 = sphi 0, %s83
      %s101 = sphi 0, %s101
      %s103 = sphi 0, %s101
      %s104 = sphi 0, %s103
      %s118 = sphi 0, %s104
      %s126 = sphi 0, %s128
      %s129 = sphi 0, %s126
      %s130 = sphi 0, %s129
      %s146 = sphi 0, %s130
    $region4: #{tpu_custom_call.1} parent=1 // loop_header_branch
      %16 = sbr.rel (%p14) target = $region8
    $region5: #{tpu_custom_call.1} parent=1 // loop_body
      %s18 = ssub.s32 %s13, 1
      %s19 = ssub.s32 %s13, 2
      %s26 = sadd.s32 1, %s21
      %p27 = scmp.ge.s32.totalorder %s26, 2
      %s28 = scalar_select %p27, 0, %s26
      %s29 = sadd.s32 1, %s20
      %s30 = scalar_select %p27, %s29, %s20
      %p31 = scmp.ge.s32.totalorder %s30, 2
      %s32 = scalar_select %p31, 0, %s30
      %s33 = ssub.s32 %s21, %s28
      %p34 = scmp.eq.s32.totalorder %s33, 0
      %s36 = sadd.s32 %s35, 1
      %s37 = scalar_select %p34, %s35, %s36
      %p40 = pneg %p34
      %p41 = scmp.eq.s32.totalorder %s13, 3
      %p42 = por %p40, %p41
      %p43 = scmp.ne.s32.totalorder %s35, %s38
      %p44 = scmp.eq.s32.totalorder %s13, 0
      %p45 = por %p43, %p44
      %p46 = scmp.ne.s32.totalorder %s35, %s38
      %p47 = scmp.eq.s32.totalorder %s18, 3
      %p48 = por %p46, %p47
      %p49 = scmp.ne.s32.totalorder %s38, %s39
      %p50 = scmp.eq.s32.totalorder %s18, 0
      %p51 = por %p49, %p50
      %p52 = scmp.ne.s32.totalorder %s38, %s39
      %p53 = scmp.eq.s32.totalorder %s19, 3
      %p54 = por %p52, %p53
      %p56 = scmp.ne.s32.totalorder %s39, %s55
      %p57 = scmp.eq.s32.totalorder %s19, 0
      %p58 = por %p56, %p57
      %s60 = sadd.s32 %s59, 1
      %p63 = scmp.eq.s32.totalorder %s13, 3
      %p64 = scmp.ne.s32.totalorder %s59, %s61
      %p65 = scmp.eq.s32.totalorder %s13, 0
      %p66 = por %p64, %p65
      %p67 = scmp.ne.s32.totalorder %s59, %s61
      %p68 = scmp.eq.s32.totalorder %s18, 3
      %p69 = por %p67, %p68
      %p70 = scmp.ne.s32.totalorder %s61, %s62
      %p71 = scmp.eq.s32.totalorder %s18, 0
      %p72 = por %p70, %p71
      %p73 = scmp.ne.s32.totalorder %s61, %s62
      %p74 = scmp.eq.s32.totalorder %s19, 3
      %p75 = por %p73, %p74
      %p77 = scmp.ne.s32.totalorder %s62, %s76
      %p78 = scmp.eq.s32.totalorder %s19, 0
      %p79 = por %p77, %p78
      %s81 = sadd.s32 %s80, 1
      %p84 = scmp.eq.s32.totalorder %s13, 3
      %p85 = scmp.ne.s32.totalorder %s80, %s82
      %p86 = scmp.eq.s32.totalorder %s13, 0
      %p87 = por %p85, %p86
      %p88 = scmp.ne.s32.totalorder %s80, %s82
      %p89 = scmp.eq.s32.totalorder %s18, 3
      %p90 = por %p88, %p89
      %p91 = scmp.ne.s32.totalorder %s82, %s83
      %p92 = scmp.eq.s32.totalorder %s18, 0
      %p93 = por %p91, %p92
      %p94 = scmp.ne.s32.totalorder %s82, %s83
      %p95 = scmp.eq.s32.totalorder %s19, 3
      %p96 = por %p94, %p95
      %p98 = scmp.ne.s32.totalorder %s83, %s97
      %p99 = scmp.eq.s32.totalorder %s19, 0
      %p100 = por %p98, %p99
      %s102 = sadd.s32 %s101, 1
      %p105 = scmp.eq.s32.totalorder %s13, 3
      %p106 = scmp.ne.s32.totalorder %s101, %s103
      %p107 = scmp.eq.s32.totalorder %s13, 0
      %p108 = por %p106, %p107
      %p109 = scmp.ne.s32.totalorder %s101, %s103
      %p110 = scmp.eq.s32.totalorder %s18, 3
      %p111 = por %p109, %p110
      %p112 = scmp.ne.s32.totalorder %s103, %s104
      %p113 = scmp.eq.s32.totalorder %s18, 0
      %p114 = por %p112, %p113
      %p115 = scmp.ne.s32.totalorder %s103, %s104
      %p116 = scmp.eq.s32.totalorder %s19, 3
      %p117 = por %p115, %p116
      %p119 = scmp.ne.s32.totalorder %s104, %s118
      %p120 = scmp.eq.s32.totalorder %s19, 0
      %p121 = por %p119, %p120
      %s122 = smul.u32 %s21, %s20
      %s123 = smul.u32 %s28, %s32
      %s124 = ssub.s32 %s122, %s123
      %p125 = scmp.eq.s32.totalorder %s124, 0
      %s127 = sadd.s32 %s126, 1
      %s128 = scalar_select %p125, %s126, %s127
      %p131 = pneg %p125
      %p132 = scmp.eq.s32.totalorder %s13, 3
      %p133 = por %p131, %p132
      %p134 = scmp.ne.s32.totalorder %s126, %s129
      %p135 = scmp.eq.s32.totalorder %s13, 0
      %p136 = por %p134, %p135
      %p137 = scmp.ne.s32.totalorder %s126, %s129
      %p138 = scmp.eq.s32.totalorder %s18, 3
      %p139 = por %p137, %p138
      %p140 = scmp.ne.s32.totalorder %s129, %s130
      %p141 = scmp.eq.s32.totalorder %s18, 0
      %p142 = por %p140, %p141
      %p143 = scmp.ne.s32.totalorder %s129, %s130
      %p144 = scmp.eq.s32.totalorder %s19, 3
      %p145 = por %p143, %p144
      %p147 = scmp.ne.s32.totalorder %s130, %s146
      %p148 = scmp.eq.s32.totalorder %s19, 0
      %p149 = por %p147, %p148
      %p150 = scmp.le.s32.totalorder 1, %s13
      %p151 = scmp.lt.s32.totalorder %s13, 5
      %p152 = pnand %p150, %p151
      %p153 = pneg %p152
      // Predicated region
      $region9: #{tpu_custom_call.1} parent=5 // pred_check
        _
      $region10: #{tpu_custom_call.1} parent=5 // pred_check_branch
        %155 = sbr.rel (%p152) target = $region12
      $region11: #{tpu_custom_call.1} parent=5 // pred_region
        %s156 = ssub.s32 %s13, 1
        // Predicated region
        $region13: #{tpu_custom_call.1} parent=11 // pred_check
          %p157 = pneg %p72
        $region14: #{tpu_custom_call.1} parent=11 // pred_check_branch
          %159 = sbr.rel (%p157) target = $region16
        $region15: #{tpu_custom_call.1} parent=11 // pred_region
          _
        $region16: #{tpu_custom_call.1} parent=11 // pred_fallthru
          _
        // Predicated region
        $region17: #{tpu_custom_call.1} parent=11 // pred_check
          %p160 = pneg %p93
        $region18: #{tpu_custom_call.1} parent=11 // pred_check_branch
          %162 = sbr.rel (%p160) target = $region20
        $region19: #{tpu_custom_call.1} parent=11 // pred_region
          _
        $region20: #{tpu_custom_call.1} parent=11 // pred_fallthru
          _
        // Predicated region
        $region21: #{tpu_custom_call.1} parent=11 // pred_check
          %p163 = pneg %p114
        $region22: #{tpu_custom_call.1} parent=11 // pred_check_branch
          %165 = sbr.rel (%p163) target = $region24
        $region23: #{tpu_custom_call.1} parent=11 // pred_region
          _
        $region24: #{tpu_custom_call.1} parent=11 // pred_fallthru
          _
      $region12: #{tpu_custom_call.1} parent=5 // pred_fallthru
        _
      %p166 = scmp.lt.s32.totalorder %s13, 4
      // Predicated region
      $region25: #{tpu_custom_call.1} parent=5 // pred_check
        %p167 = pneg %p166
      $region26: #{tpu_custom_call.1} parent=5 // pred_check_branch
        %169 = sbr.rel (%p167) target = $region28
      $region27: #{tpu_custom_call.1} parent=5 // pred_region
        // Predicated region
        $region29: #{tpu_custom_call.1} parent=27 // pred_check
          %p170 = pneg %p45
        $region30: #{tpu_custom_call.1} parent=27 // pred_check_branch
          %172 = sbr.rel (%p170) target = $region32
        $region31: #{tpu_custom_call.1} parent=27 // pred_region
          %p173 = scmp.lt.s32.totalorder %s21, 1
          %s174 = scalar_select %p173, %s21, 1
          %s175 = smul.addr %s174, 3
          %s176 = smul.addr %s175, 8
          %s177 = scalar_lea.vmem %s0, %s176
        $region32: #{tpu_custom_call.1} parent=27 // pred_fallthru
          _
      $region28: #{tpu_custom_call.1} parent=5 // pred_fallthru
        _
      %p178 = scmp.le.s32.totalorder 1, %s13
      %p179 = scmp.lt.s32.totalorder %s13, 5
      %p180 = pnand %p178, %p179
      %p181 = pneg %p180
      // Predicated region
      $region33: #{tpu_custom_call.1} parent=5 // pred_check
        _
      $region34: #{tpu_custom_call.1} parent=5 // pred_check_branch
        %183 = sbr.rel (%p180) target = $region36
      $region35: #{tpu_custom_call.1} parent=5 // pred_region
        %s184 = ssub.s32 %s13, 1
        %p185 = scmp.lt.s32.totalorder %s23, 1
        %s186 = scalar_select %p185, %s23, 1
        %s187 = smul.addr %s186, 3
        %s188 = smul.addr %s187, 8
        %s189 = scalar_lea.vmem %s0, %s188
        %p190 = pneg %p51
        %p191 = pneg %p48
        %p192 = pneg %p72
        %p193 = pneg %p69
        %p194 = pneg %p93
        %p195 = pneg %p90
        %p196 = pneg %p114
        %p197 = pneg %p111
        %p198 = pneg %p142
        %p199 = pneg %p139
        %s200 = sand.u32 %s129, 1
        %s201 = scalar_lea.sflag [#allocation6], %s200
        %s202 = sand.u32 %s129, 1
        %s203 = smul.addr %s202, 24
        %s204 = scalar_lea.vmem [#allocation5], %s203
        %p205 = scmp.lt.s32.totalorder %s23, 1
        %s206 = scalar_select %p205, %s23, 1
        %s207 = smul.addr %s206, 3
        %s208 = smul.addr %s207, 8
        %s209 = scalar_lea.vmem %s0, %s208
        %s210 = smul.u32 %s23, %s22
        %p211 = scmp.eq.s32.totalorder %s22, 0
        %p212 = scmp.eq.s32.totalorder %s23, 0
        %p213 = pnand %p211, %p212
        %p214 = pneg %p213
        // Predicated region
        $region37: #{tpu_custom_call.1} parent=35 // pred_check
          _
        $region38: #{tpu_custom_call.1} parent=35 // pred_check_branch
          %216 = sbr.rel (%p213) target = $region40
        $region39: #{tpu_custom_call.1} parent=35 // pred_region
          %vm217 = vcmask 72704
          %218 = vst.msk [vmem:[#allocation2] sm:$0xff] %vm217, 0.0
        $region40: #{tpu_custom_call.1} parent=35 // pred_fallthru
          _
        // Predicated region
        $region41: #{tpu_custom_call.1} parent=35 // pred_check
          %p219 = pneg %p211
        $region42: #{tpu_custom_call.1} parent=35 // pred_check_branch
          %221 = sbr.rel (%p219) target = $region44
        $region43: #{tpu_custom_call.1} parent=35 // pred_region
          %v222 = vld [vmem:[#allocation2] sm:$0xff]
          %v223 = vld [vmem:[%s209] sm:$0xff]
          %v224 = vld [vmem:[%s209 + $0x8] sm:$0xff]
          %v225 = vld [vmem:[%s209 + $0x10] sm:$0xff]
          %v226 = vld [vmem:[%s2] sm:$0xff]
          %v227 = vld [vmem:[%s2 + $0x8] sm:$0xff]
          %v228 = vld [vmem:[%s2 + $0x10] sm:$0xff]
          %v229 = vld [vmem:[%s2 + $0x18] sm:$0xff]
          %v230 = vld [vmem:[%s2 + $0x20] sm:$0xff]
          %v231 = vld [vmem:[%s2 + $0x28] sm:$0xff]
          %v232 = vld [vmem:[%s2 + $0x30] sm:$0xff]
          %v233 = vld [vmem:[%s2 + $0x38] sm:$0xff]
          %v234 = vld [vmem:[%s2 + $0x40] sm:$0xff]
          %v235 = vld [vmem:[%s2 + $0x48] sm:$0xff]
          %v236 = vld [vmem:[%s2 + $0x50] sm:$0xff]
          %v237 = vld [vmem:[%s2 + $0x58] sm:$0xff]
          %v238 = vld [vmem:[%s2 + $0x60] sm:$0xff]
          %v239 = vld [vmem:[%s2 + $0x68] sm:$0xff]
          %v240 = vld [vmem:[%s2 + $0x70] sm:$0xff]
          %v241 = vld [vmem:[%s2 + $0x78] sm:$0xff]
          %v242 = vld [vmem:[%s2 + $0x80] sm:$0xff]
          %v243 = vld [vmem:[%s2 + $0x88] sm:$0xff]
          %v244 = vld [vmem:[%s2 + $0x90] sm:$0xff]
          %v245 = vld [vmem:[%s2 + $0x98] sm:$0xff]
          %v246 = vld [vmem:[%s2 + $0xa0] sm:$0xff]
          %v247 = vld [vmem:[%s2 + $0xa8] sm:$0xff]
          %v248 = vld [vmem:[%s2 + $0xb0] sm:$0xff]
          %v249 = vld [vmem:[%s2 + $0xb8] sm:$0xff]
          %v250 = vld [vmem:[%s2 + $0xc0] sm:$0xff]
          %v251 = vld [vmem:[%s2 + $0xc8] sm:$0xff]
          %v252 = vld [vmem:[%s2 + $0xd0] sm:$0xff]
          %v253 = vld [vmem:[%s2 + $0xd8] sm:$0xff]
          %v254 = vld [vmem:[%s2 + $0xe0] sm:$0xff]
          %v255 = vld [vmem:[%s2 + $0xe8] sm:$0xff]
          %v256 = vld [vmem:[%s2 + $0xf0] sm:$0xff]
          %v257 = vld [vmem:[%s2 + $0xf8] sm:$0xff]
          %v258 = vld [vmem:[%s2 + $0x100] sm:$0xff]
          %v259 = vld [vmem:[%s2 + $0x108] sm:$0xff]
          %v260 = vld [vmem:[%s2 + $0x110] sm:$0xff]
          %v261 = vld [vmem:[%s2 + $0x118] sm:$0xff]
          %v262 = vld [vmem:[%s2 + $0x120] sm:$0xff]
          %v263 = vld [vmem:[%s2 + $0x128] sm:$0xff]
          %v264 = vld [vmem:[%s2 + $0x130] sm:$0xff]
          %v265 = vld [vmem:[%s2 + $0x138] sm:$0xff]
          %v266 = vld [vmem:[%s2 + $0x140] sm:$0xff]
          %v267 = vld [vmem:[%s2 + $0x148] sm:$0xff]
          %v268 = vld [vmem:[%s2 + $0x150] sm:$0xff]
          %v269 = vld [vmem:[%s2 + $0x158] sm:$0xff]
          %v270 = vld [vmem:[%s2 + $0x160] sm:$0xff]
          %v271 = vld [vmem:[%s2 + $0x168] sm:$0xff]
          %v272 = vld [vmem:[%s2 + $0x170] sm:$0xff]
          %v273 = vld [vmem:[%s2 + $0x178] sm:$0xff]
          %274 = vmatprep.subr.mxu0 0.0
          %275 = vmatpush1.msra.mxu0 %v226
          %276 = vmatprep.subr.mxu0 0.0
          %277 = vmatpush1.msra.mxu0 %v227
          %278 = vmatprep.subr.mxu0 0.0
          %279 = vmatpush1.msra.mxu0 %v228
          %280 = vmatprep.subr.mxu0 0.0
          %281 = vmatpush1.msra.mxu0 %v229
          %282 = vmatprep.subr.mxu0 0.0
          %283 = vmatpush1.msra.mxu0 %v230
          %284 = vmatprep.subr.mxu0 0.0
          %285 = vmatpush1.msra.mxu0 %v231
          %286 = vmatprep.subr.mxu0 0.0
          %287 = vmatpush1.msra.mxu0 %v232
          %288 = vmatprep.subr.mxu0 0.0
          %289 = vmatpush1.msra.mxu0 %v233
          %290 = vmatprep.subr.mxu0 0.0
          %291 = vmatpush1.msra.mxu0 %v234
          %292 = vmatprep.subr.mxu0 0.0
          %293 = vmatpush1.msra.mxu0 %v235
          %294 = vmatprep.subr.mxu0 0.0
          %295 = vmatpush1.msra.mxu0 %v236
          %296 = vmatprep.subr.mxu0 0.0
          %297 = vmatpush1.msra.mxu0 %v237
          %298 = vmatprep.subr.mxu0 0.0
          %299 = vmatpush1.msra.mxu0 %v238
          %300 = vmatprep.subr.mxu0 0.0
          %301 = vmatpush1.msra.mxu0 %v239
          %302 = vmatprep.subr.mxu0 0.0
          %303 = vmatpush1.msra.mxu0 %v240
          %304 = vmatprep.subr.mxu0 0.0
          %305 = vmatpush1.msra.mxu0 %v241
          %306 = vmatprep.subr.mxu0 0.0
          %307 = vmatpush1.msra.mxu0 %v242
          %308 = vmatprep.subr.mxu0 0.0
          %309 = vmatpush1.msra.mxu0 %v243
          %310 = vmatprep.subr.mxu0 0.0
          %311 = vmatpush1.msra.mxu0 %v244
          %312 = vmatprep.subr.mxu0 0.0
          %313 = vmatpush1.msra.mxu0 %v245
          %314 = vmatprep.subr.mxu0 0.0
          %315 = vmatpush1.msra.mxu0 %v246
          %316 = vmatprep.subr.mxu0 0.0
          %317 = vmatpush1.msra.mxu0 %v247
          %318 = vmatprep.subr.mxu0 0.0
          %319 = vmatpush1.msra.mxu0 %v248
          %320 = vmatprep.subr.mxu0 0.0
          %321 = vmatpush1.msra.mxu0 %v249
          %322 = vmatprep.subr.mxu0 0.0
          %323 = vmatpush1.msra.mxu0 %v250
          %324 = vmatprep.subr.mxu0 0.0
          %325 = vmatpush1.msra.mxu0 %v251
          %326 = vmatprep.subr.mxu0 0.0
          %327 = vmatpush1.msra.mxu0 %v252
          %328 = vmatprep.subr.mxu0 0.0
          %329 = vmatpush1.msra.mxu0 %v253
          %330 = vmatprep.subr.mxu0 0.0
          %331 = vmatpush1.msra.mxu0 %v254
          %332 = vmatprep.subr.mxu0 0.0
          %333 = vmatpush1.msra.mxu0 %v255
          %334 = vmatprep.subr.mxu0 0.0
          %335 = vmatpush1.msra.mxu0 %v256
          %336 = vmatprep.subr.mxu0 0.0
          %337 = vmatpush1.msra.mxu0 %v257
          %338 = vmatprep.mubr.f32.mxu0 %v224
          %339 = vmatmul.mubr.f32.gmra.mrb[0].mxu0 %v223
          %v340 = vpop.f32.mrb[0].mxu0
          %v341 = vadd.f32 0.0, %v340
          %v342 = vpop.f32.mrb[0].mxu0
          %343 = vdwg.mxu0
          %344 = vmatprep.subr.mxu0 0.0
          %345 = vmatpush1.msra.mxu0 %v258
          %346 = vmatprep.subr.mxu0 0.0
          %347 = vmatpush1.msra.mxu0 %v259
          %348 = vmatprep.subr.mxu0 0.0
          %349 = vmatpush1.msra.mxu0 %v260
          %350 = vmatprep.subr.mxu0 0.0
          %351 = vmatpush1.msra.mxu0 %v261
          %352 = vmatprep.subr.mxu0 0.0
          %353 = vmatpush1.msra.mxu0 %v262
          %354 = vmatprep.subr.mxu0 0.0
          %355 = vmatpush1.msra.mxu0 %v263
          %356 = vmatprep.subr.mxu0 0.0
          %357 = vmatpush1.msra.mxu0 %v264
          %358 = vmatprep.subr.mxu0 0.0
          %359 = vmatpush1.msra.mxu0 %v265
          %360 = vmatprep.subr.mxu0 0.0
          %361 = vmatpush1.msra.mxu0 %v266
          %362 = vmatprep.subr.mxu0 0.0
          %363 = vmatpush1.msra.mxu0 %v267
          %364 = vmatprep.subr.mxu0 0.0
          %365 = vmatpush1.msra.mxu0 %v268
          %366 = vmatprep.subr.mxu0 0.0
          %367 = vmatpush1.msra.mxu0 %v269
          %368 = vmatprep.subr.mxu0 0.0
          %369 = vmatpush1.msra.mxu0 %v270
          %370 = vmatprep.subr.mxu0 0.0
          %371 = vmatpush1.msra.mxu0 %v271
          %372 = vmatprep.subr.mxu0 0.0
          %373 = vmatpush1.msra.mxu0 %v272
          %374 = vmatprep.subr.mxu0 0.0
          %375 = vmatpush1.msra.mxu0 %v273
          %376 = vmatprep.subr.mxu0 0.0
          %377 = vmatpush1.msra.mxu0 0.0
          %378 = vmatprep.subr.mxu0 0.0
          %379 = vmatpush1.msra.mxu0 0.0
          %380 = vmatprep.subr.mxu0 0.0
          %381 = vmatpush1.msra.mxu0 0.0
          %382 = vmatprep.subr.mxu0 0.0
          %383 = vmatpush1.msra.mxu0 0.0
          %384 = vmatprep.subr.mxu0 0.0
          %385 = vmatpush1.msra.mxu0 0.0
          %386 = vmatprep.subr.mxu0 0.0
          %387 = vmatpush1.msra.mxu0 0.0
          %388 = vmatprep.subr.mxu0 0.0
          %389 = vmatpush1.msra.mxu0 0.0
          %390 = vmatprep.subr.mxu0 0.0
          %391 = vmatpush1.msra.mxu0 0.0
          %392 = vmatprep.subr.mxu0 0.0
          %393 = vmatpush1.msra.mxu0 0.0
          %394 = vmatprep.subr.mxu0 0.0
          %395 = vmatpush1.msra.mxu0 0.0
          %396 = vmatprep.subr.mxu0 0.0
          %397 = vmatpush1.msra.mxu0 0.0
          %398 = vmatprep.subr.mxu0 0.0
          %399 = vmatpush1.msra.mxu0 0.0
          %400 = vmatprep.subr.mxu0 0.0
          %401 = vmatpush1.msra.mxu0 0.0
          %402 = vmatprep.subr.mxu0 0.0
          %403 = vmatpush1.msra.mxu0 0.0
          %404 = vmatprep.subr.mxu0 0.0
          %405 = vmatpush1.msra.mxu0 0.0
          %406 = vmatprep.subr.mxu0 0.0
          %407 = vmatpush1.msra.mxu0 0.0
          %408 = vmatprep.mubr.f32.mxu0 0.0
          %409 = vmatmul.mubr.f32.gmra.mrb[0].mxu0 %v225
          %v410 = vpop.f32.mrb[0].mxu0
          %v411 = vadd.f32 %v341, %v410
          %v412 = vpop.f32.mrb[0].mxu0
          %413 = vdwg.mxu0
          %v414 = vadd.f32 %v222, %v411
          %vm415 = vcmask 72704
          %416 = vst.msk [vmem:[#allocation2] sm:$0xff] %vm415, %v414
        $region44: #{tpu_custom_call.1} parent=35 // pred_fallthru
          _
        %p417 = scmp.eq.s32.totalorder %s22, 1
        // Predicated region
        $region45: #{tpu_custom_call.1} parent=35 // pred_check
          %p418 = pneg %p417
        $region46: #{tpu_custom_call.1} parent=35 // pred_check_branch
          %420 = sbr.rel (%p418) target = $region48
        $region47: #{tpu_custom_call.1} parent=35 // pred_region
          // Predicated region
          $region49: #{tpu_custom_call.1} parent=47 // pred_check
            %p421 = pneg %p212
          $region50: #{tpu_custom_call.1} parent=47 // pred_check_branch
            %423 = sbr.rel (%p421) target = $region52
          $region51: #{tpu_custom_call.1} parent=47 // pred_region
            %v424 = vld [vmem:[%s1] sm:$0xff]
            %v425 = vld [vmem:[#allocation2] sm:$0xff]
            %427 = vrot.lane.b32.xlu0 %v424, 120
            %v428 = vpop.permute.xlu0 %427
            %430 = vrot.lane.b32.xlu0 %v425, 127
            %v431 = vpop.permute.xlu0 %430
            %vm433 = vcmask 64512
            %v434 = vsel %vm433, %v428, 0
            %436 = vmatprep.subr.mxu0 0.0
            %437 = vmatpush1.msra.mxu0 %v431
            %438 = vmatprep.subr.mxu0 0.0
            %439 = vmatpush1.msra.mxu0 0.0
            %440 = vmatprep.subr.mxu0 0.0
            %441 = vmatpush1.msra.mxu0 0.0
            %442 = vmatprep.subr.mxu0 0.0
            %443 = vmatpush1.msra.mxu0 0.0
            %444 = vmatprep.subr.mxu0 0.0
            %445 = vmatpush1.msra.mxu0 0.0
            %446 = vmatprep.subr.mxu0 0.0
            %447 = vmatpush1.msra.mxu0 0.0
            %448 = vmatprep.subr.mxu0 0.0
            %449 = vmatpush1.msra.mxu0 0.0
            %450 = vmatprep.subr.mxu0 0.0
            %451 = vmatpush1.msra.mxu0 0.0
            %452 = vmatprep.subr.mxu0 0.0
            %453 = vmatpush1.msra.mxu0 0.0
            %454 = vmatprep.subr.mxu0 0.0
            %455 = vmatpush1.msra.mxu0 0.0
            %456 = vmatprep.subr.mxu0 0.0
            %457 = vmatpush1.msra.mxu0 0.0
            %458 = vmatprep.subr.mxu0 0.0
            %459 = vmatpush1.msra.mxu0 0.0
            %460 = vmatprep.subr.mxu0 0.0
            %461 = vmatpush1.msra.mxu0 0.0
            %462 = vmatprep.subr.mxu0 0.0
            %463 = vmatpush1.msra.mxu0 0.0
            %464 = vmatprep.subr.mxu0 0.0
            %465 = vmatpush1.msra.mxu0 0.0
            %466 = vmatprep.subr.mxu0 0.0
            %467 = vmatpush1.msra.mxu0 0.0
            %468 = vmatprep.subr.mxu0 0.0
            %469 = vmatpush1.msra.mxu0 0.0
            %470 = vmatprep.subr.mxu0 0.0
            %471 = vmatpush1.msra.mxu0 0.0
            %472 = vmatprep.subr.mxu0 0.0
            %473 = vmatpush1.msra.mxu0 0.0
            %474 = vmatprep.subr.mxu0 0.0
            %475 = vmatpush1.msra.mxu0 0.0
            %476 = vmatprep.subr.mxu0 0.0
            %477 = vmatpush1.msra.mxu0 0.0
            %478 = vmatprep.subr.mxu0 0.0
            %479 = vmatpush1.msra.mxu0 0.0
            %480 = vmatprep.subr.mxu0 0.0
            %481 = vmatpush1.msra.mxu0 0.0
            %482 = vmatprep.subr.mxu0 0.0
            %483 = vmatpush1.msra.mxu0 0.0
            %484 = vmatprep.subr.mxu0 0.0
            %485 = vmatpush1.msra.mxu0 0.0
            %486 = vmatprep.subr.mxu0 0.0
            %487 = vmatpush1.msra.mxu0 0.0
            %488 = vmatprep.subr.mxu0 0.0
            %489 = vmatpush1.msra.mxu0 0.0
            %490 = vmatprep.subr.mxu0 0.0
            %491 = vmatpush1.msra.mxu0 0.0
            %492 = vmatprep.subr.mxu0 0.0
            %493 = vmatpush1.msra.mxu0 0.0
            %494 = vmatprep.subr.mxu0 0.0
            %495 = vmatpush1.msra.mxu0 0.0
            %496 = vmatprep.subr.mxu0 0.0
            %497 = vmatpush1.msra.mxu0 0.0
            %498 = vmatprep.subr.mxu0 0.0
            %499 = vmatpush1.msra.mxu0 0.0
            %500 = vmatprep.mubr.f32.mxu0 0.0
            %501 = vmatmul.mubr.f32.gmra.mrb[0].mxu0 %v434
            %v502 = vpop.f32.mrb[0].mxu0
            %v503 = vadd.f32 0.0, %v502
            %v504 = vpop.f32.mrb[0].mxu0
            %505 = vdwg.mxu0
            %v506 = vsel %vm433, %v424, 0
            %508 = vmatprep.subr.mxu0 0.0
            %509 = vmatpush1.msra.mxu0 %v425
            %510 = vmatprep.subr.mxu0 0.0
            %511 = vmatpush1.msra.mxu0 0.0
            %512 = vmatprep.subr.mxu0 0.0
            %513 = vmatpush1.msra.mxu0 0.0
            %514 = vmatprep.subr.mxu0 0.0
            %515 = vmatpush1.msra.mxu0 0.0
            %516 = vmatprep.subr.mxu0 0.0
            %517 = vmatpush1.msra.mxu0 0.0
            %518 = vmatprep.subr.mxu0 0.0
            %519 = vmatpush1.msra.mxu0 0.0
            %520 = vmatprep.subr.mxu0 0.0
            %521 = vmatpush1.msra.mxu0 0.0
            %522 = vmatprep.subr.mxu0 0.0
            %523 = vmatpush1.msra.mxu0 0.0
            %524 = vmatprep.subr.mxu0 0.0
            %525 = vmatpush1.msra.mxu0 0.0
            %526 = vmatprep.subr.mxu0 0.0
            %527 = vmatpush1.msra.mxu0 0.0
            %528 = vmatprep.subr.mxu0 0.0
            %529 = vmatpush1.msra.mxu0 0.0
            %530 = vmatprep.subr.mxu0 0.0
            %531 = vmatpush1.msra.mxu0 0.0
            %532 = vmatprep.subr.mxu0 0.0
            %533 = vmatpush1.msra.mxu0 0.0
            %534 = vmatprep.subr.mxu0 0.0
            %535 = vmatpush1.msra.mxu0 0.0
            %536 = vmatprep.subr.mxu0 0.0
            %537 = vmatpush1.msra.mxu0 0.0
            %538 = vmatprep.subr.mxu0 0.0
            %539 = vmatpush1.msra.mxu0 0.0
            %540 = vmatprep.subr.mxu0 0.0
            %541 = vmatpush1.msra.mxu0 0.0
            %542 = vmatprep.subr.mxu0 0.0
            %543 = vmatpush1.msra.mxu0 0.0
            %544 = vmatprep.subr.mxu0 0.0
            %545 = vmatpush1.msra.mxu0 0.0
            %546 = vmatprep.subr.mxu0 0.0
            %547 = vmatpush1.msra.mxu0 0.0
            %548 = vmatprep.subr.mxu0 0.0
            %549 = vmatpush1.msra.mxu0 0.0
            %550 = vmatprep.subr.mxu0 0.0
            %551 = vmatpush1.msra.mxu0 0.0
            %552 = vmatprep.subr.mxu0 0.0
            %553 = vmatpush1.msra.mxu0 0.0
            %554 = vmatprep.subr.mxu0 0.0
            %555 = vmatpush1.msra.mxu0 0.0
            %556 = vmatprep.subr.mxu0 0.0
            %557 = vmatpush1.msra.mxu0 0.0
            %558 = vmatprep.subr.mxu0 0.0
            %559 = vmatpush1.msra.mxu0 0.0
            %560 = vmatprep.subr.mxu0 0.0
            %561 = vmatpush1.msra.mxu0 0.0
            %562 = vmatprep.subr.mxu0 0.0
            %563 = vmatpush1.msra.mxu0 0.0
            %564 = vmatprep.subr.mxu0 0.0
            %565 = vmatpush1.msra.mxu0 0.0
            %566 = vmatprep.subr.mxu0 0.0
            %567 = vmatpush1.msra.mxu0 0.0
            %568 = vmatprep.subr.mxu0 0.0
            %569 = vmatpush1.msra.mxu0 0.0
            %570 = vmatprep.subr.mxu0 0.0
            %571 = vmatpush1.msra.mxu0 0.0
            %572 = vmatprep.mubr.f32.mxu0 0.0
            %573 = vmatmul.mubr.f32.gmra.mrb[0].mxu0 %v506
            %v574 = vpop.f32.mrb[0].mxu0
            %v575 = vadd.f32 %v503, %v574
            %v576 = vpop.f32.mrb[0].mxu0
            %577 = vdwg.mxu0
            %578 = vrot.lane.b32.xlu0 %v424, 112
            %v579 = vpop.permute.xlu0 %578
            %580 = vrot.lane.b32.xlu0 %v425, 126
            %v581 = vpop.permute.xlu0 %580
            %v583 = vsel %vm433, %v579, 0
            %585 = vmatprep.subr.mxu0 0.0
            %586 = vmatpush1.msra.mxu0 %v581
            %587 = vmatprep.subr.mxu0 0.0
            %588 = vmatpush1.msra.mxu0 0.0
            %589 = vmatprep.subr.mxu0 0.0
            %590 = vmatpush1.msra.mxu0 0.0
            %591 = vmatprep.subr.mxu0 0.0
            %592 = vmatpush1.msra.mxu0 0.0
            %593 = vmatprep.subr.mxu0 0.0
            %594 = vmatpush1.msra.mxu0 0.0
            %595 = vmatprep.subr.mxu0 0.0
            %596 = vmatpush1.msra.mxu0 0.0
            %597 = vmatprep.subr.mxu0 0.0
            %598 = vmatpush1.msra.mxu0 0.0
            %599 = vmatprep.subr.mxu0 0.0
            %600 = vmatpush1.msra.mxu0 0.0
            %601 = vmatprep.subr.mxu0 0.0
            %602 = vmatpush1.msra.mxu0 0.0
            %603 = vmatprep.subr.mxu0 0.0
            %604 = vmatpush1.msra.mxu0 0.0
            %605 = vmatprep.subr.mxu0 0.0
            %606 = vmatpush1.msra.mxu0 0.0
            %607 = vmatprep.subr.mxu0 0.0
            %608 = vmatpush1.msra.mxu0 0.0
            %609 = vmatprep.subr.mxu0 0.0
            %610 = vmatpush1.msra.mxu0 0.0
            %611 = vmatprep.subr.mxu0 0.0
            %612 = vmatpush1.msra.mxu0 0.0
            %613 = vmatprep.subr.mxu0 0.0
            %614 = vmatpush1.msra.mxu0 0.0
            %615 = vmatprep.subr.mxu0 0.0
            %616 = vmatpush1.msra.mxu0 0.0
            %617 = vmatprep.subr.mxu0 0.0
            %618 = vmatpush1.msra.mxu0 0.0
            %619 = vmatprep.subr.mxu0 0.0
            %620 = vmatpush1.msra.mxu0 0.0
            %621 = vmatprep.subr.mxu0 0.0
            %622 = vmatpush1.msra.mxu0 0.0
            %623 = vmatprep.subr.mxu0 0.0
            %624 = vmatpush1.msra.mxu0 0.0
            %625 = vmatprep.subr.mxu0 0.0
            %626 = vmatpush1.msra.mxu0 0.0
            %627 = vmatprep.subr.mxu0 0.0
            %628 = vmatpush1.msra.mxu0 0.0
            %629 = vmatprep.subr.mxu0 0.0
            %630 = vmatpush1.msra.mxu0 0.0
            %631 = vmatprep.subr.mxu0 0.0
            %632 = vmatpush1.msra.mxu0 0.0
            %633 = vmatprep.subr.mxu0 0.0
            %634 = vmatpush1.msra.mxu0 0.0
            %635 = vmatprep.subr.mxu0 0.0
            %636 = vmatpush1.msra.mxu0 0.0
            %637 = vmatprep.subr.mxu0 0.0
            %638 = vmatpush1.msra.mxu0 0.0
            %639 = vmatprep.subr.mxu0 0.0
            %640 = vmatpush1.msra.mxu0 0.0
            %641 = vmatprep.subr.mxu0 0.0
            %642 = vmatpush1.msra.mxu0 0.0
            %643 = vmatprep.subr.mxu0 0.0
            %644 = vmatpush1.msra.mxu0 0.0
            %645 = vmatprep.subr.mxu0 0.0
            %646 = vmatpush1.msra.mxu0 0.0
            %647 = vmatprep.subr.mxu0 0.0
            %648 = vmatpush1.msra.mxu0 0.0
            %649 = vmatprep.mubr.f32.mxu0 0.0
            %650 = vmatmul.mubr.f32.gmra.mrb[0].mxu0 %v583
            %v651 = vpop.f32.mrb[0].mxu0
            %v652 = vadd.f32 0.0, %v651
            %v653 = vpop.f32.mrb[0].mxu0
            %654 = vdwg.mxu0
            %v655 = vadd.f32 %v575, %v652
            %656 = vrot.lane.b32.xlu0 %v424, 104
            %v657 = vpop.permute.xlu0 %656
            %658 = vrot.lane.b32.xlu0 %v425, 125
            %v659 = vpop.permute.xlu0 %658
            %v661 = vsel %vm433, %v657, 0
            %663 = vmatprep.subr.mxu0 0.0
            %664 = vmatpush1.msra.mxu0 %v659
            %665 = vmatprep.subr.mxu0 0.0
            %666 = vmatpush1.msra.mxu0 0.0
            %667 = vmatprep.subr.mxu0 0.0
            %668 = vmatpush1.msra.mxu0 0.0
            %669 = vmatprep.subr.mxu0 0.0
            %670 = vmatpush1.msra.mxu0 0.0
            %671 = vmatprep.subr.mxu0 0.0
            %672 = vmatpush1.msra.mxu0 0.0
            %673 = vmatprep.subr.mxu0 0.0
            %674 = vmatpush1.msra.mxu0 0.0
            %675 = vmatprep.subr.mxu0 0.0
            %676 = vmatpush1.msra.mxu0 0.0
            %677 = vmatprep.subr.mxu0 0.0
            %678 = vmatpush1.msra.mxu0 0.0
            %679 = vmatprep.subr.mxu0 0.0
            %680 = vmatpush1.msra.mxu0 0.0
            %681 = vmatprep.subr.mxu0 0.0
            %682 = vmatpush1.msra.mxu0 0.0
            %683 = vmatprep.subr.mxu0 0.0
            %684 = vmatpush1.msra.mxu0 0.0
            %685 = vmatprep.subr.mxu0 0.0
            %686 = vmatpush1.msra.mxu0 0.0
            %687 = vmatprep.subr.mxu0 0.0
            %688 = vmatpush1.msra.mxu0 0.0
            %689 = vmatprep.subr.mxu0 0.0
            %690 = vmatpush1.msra.mxu0 0.0
            %691 = vmatprep.subr.mxu0 0.0
            %692 = vmatpush1.msra.mxu0 0.0
            %693 = vmatprep.subr.mxu0 0.0
            %694 = vmatpush1.msra.mxu0 0.0
            %695 = vmatprep.subr.mxu0 0.0
            %696 = vmatpush1.msra.mxu0 0.0
            %697 = vmatprep.subr.mxu0 0.0
            %698 = vmatpush1.msra.mxu0 0.0
            %699 = vmatprep.subr.mxu0 0.0
            %700 = vmatpush1.msra.mxu0 0.0
            %701 = vmatprep.subr.mxu0 0.0
            %702 = vmatpush1.msra.mxu0 0.0
            %703 = vmatprep.subr.mxu0 0.0
            %704 = vmatpush1.msra.mxu0 0.0
            %705 = vmatprep.subr.mxu0 0.0
            %706 = vmatpush1.msra.mxu0 0.0
            %707 = vmatprep.subr.mxu0 0.0
            %708 = vmatpush1.msra.mxu0 0.0
            %709 = vmatprep.subr.mxu0 0.0
            %710 = vmatpush1.msra.mxu0 0.0
            %711 = vmatprep.subr.mxu0 0.0
            %712 = vmatpush1.msra.mxu0 0.0
            %713 = vmatprep.subr.mxu0 0.0
            %714 = vmatpush1.msra.mxu0 0.0
            %715 = vmatprep.subr.mxu0 0.0
            %716 = vmatpush1.msra.mxu0 0.0
            %717 = vmatprep.subr.mxu0 0.0
            %718 = vmatpush1.msra.mxu0 0.0
            %719 = vmatprep.subr.mxu0 0.0
            %720 = vmatpush1.msra.mxu0 0.0
            %721 = vmatprep.subr.mxu0 0.0
            %722 = vmatpush1.msra.mxu0 0.0
            %723 = vmatprep.subr.mxu0 0.0
            %724 = vmatpush1.msra.mxu0 0.0
            %725 = vmatprep.subr.mxu0 0.0
            %726 = vmatpush1.msra.mxu0 0.0
            %727 = vmatprep.mubr.f32.mxu0 0.0
            %728 = vmatmul.mubr.f32.gmra.mrb[0].mxu0 %v661
            %v729 = vpop.f32.mrb[0].mxu0
            %v730 = vadd.f32 0.0, %v729
            %v731 = vpop.f32.mrb[0].mxu0
            %732 = vdwg.mxu0
            %v733 = vadd.f32 %v655, %v730
            %734 = vrot.lane.b32.xlu0 %v424, 96
            %v735 = vpop.permute.xlu0 %734
            %736 = vrot.lane.b32.xlu0 %v425, 124
            %v737 = vpop.permute.xlu0 %736
            %v739 = vsel %vm433, %v735, 0
            %741 = vmatprep.subr.mxu0 0.0
            %742 = vmatpush1.msra.mxu0 %v737
            %743 = vmatprep.subr.mxu0 0.0
            %744 = vmatpush1.msra.mxu0 0.0
            %745 = vmatprep.subr.mxu0 0.0
            %746 = vmatpush1.msra.mxu0 0.0
            %747 = vmatprep.subr.mxu0 0.0
            %748 = vmatpush1.msra.mxu0 0.0
            %749 = vmatprep.subr.mxu0 0.0
            %750 = vmatpush1.msra.mxu0 0.0
            %751 = vmatprep.subr.mxu0 0.0
            %752 = vmatpush1.msra.mxu0 0.0
            %753 = vmatprep.subr.mxu0 0.0
            %754 = vmatpush1.msra.mxu0 0.0
            %755 = vmatprep.subr.mxu0 0.0
            %756 = vmatpush1.msra.mxu0 0.0
            %757 = vmatprep.subr.mxu0 0.0
            %758 = vmatpush1.msra.mxu0 0.0
            %759 = vmatprep.subr.mxu0 0.0
            %760 = vmatpush1.msra.mxu0 0.0
            %761 = vmatprep.subr.mxu0 0.0
            %762 = vmatpush1.msra.mxu0 0.0
            %763 = vmatprep.subr.mxu0 0.0
            %764 = vmatpush1.msra.mxu0 0.0
            %765 = vmatprep.subr.mxu0 0.0
            %766 = vmatpush1.msra.mxu0 0.0
            %767 = vmatprep.subr.mxu0 0.0
            %768 = vmatpush1.msra.mxu0 0.0
            %769 = vmatprep.subr.mxu0 0.0
            %770 = vmatpush1.msra.mxu0 0.0
            %771 = vmatprep.subr.mxu0 0.0
            %772 = vmatpush1.msra.mxu0 0.0
            %773 = vmatprep.subr.mxu0 0.0
            %774 = vmatpush1.msra.mxu0 0.0
            %775 = vmatprep.subr.mxu0 0.0
            %776 = vmatpush1.msra.mxu0 0.0
            %777 = vmatprep.subr.mxu0 0.0
            %778 = vmatpush1.msra.mxu0 0.0
            %779 = vmatprep.subr.mxu0 0.0
            %780 = vmatpush1.msra.mxu0 0.0
            %781 = vmatprep.subr.mxu0 0.0
            %782 = vmatpush1.msra.mxu0 0.0
            %783 = vmatprep.subr.mxu0 0.0
            %784 = vmatpush1.msra.mxu0 0.0
            %785 = vmatprep.subr.mxu0 0.0
            %786 = vmatpush1.msra.mxu0 0.0
            %787 = vmatprep.subr.mxu0 0.0
            %788 = vmatpush1.msra.mxu0 0.0
            %789 = vmatprep.subr.mxu0 0.0
            %790 = vmatpush1.msra.mxu0 0.0
            %791 = vmatprep.subr.mxu0 0.0
            %792 = vmatpush1.msra.mxu0 0.0
            %793 = vmatprep.subr.mxu0 0.0
            %794 = vmatpush1.msra.mxu0 0.0
            %795 = vmatprep.subr.mxu0 0.0
            %796 = vmatpush1.msra.mxu0 0.0
            %797 = vmatprep.subr.mxu0 0.0
            %798 = vmatpush1.msra.mxu0 0.0
            %799 = vmatprep.subr.mxu0 0.0
            %800 = vmatpush1.msra.mxu0 0.0
            %801 = vmatprep.subr.mxu0 0.0
            %802 = vmatpush1.msra.mxu0 0.0
            %803 = vmatprep.subr.mxu0 0.0
            %804 = vmatpush1.msra.mxu0 0.0
            %805 = vmatprep.mubr.f32.mxu0 0.0
            %806 = vmatmul.mubr.f32.gmra.mrb[0].mxu0 %v739
            %v807 = vpop.f32.mrb[0].mxu0
            %v808 = vadd.f32 0.0, %v807
            %v809 = vpop.f32.mrb[0].mxu0
            %810 = vdwg.mxu0
            %v811 = vadd.f32 %v733, %v808
            %812 = vrot.lane.b32.xlu0 %v424, 88
            %v813 = vpop.permute.xlu0 %812
            %814 = vrot.lane.b32.xlu0 %v425, 123
            %v815 = vpop.permute.xlu0 %814
            %v817 = vsel %vm433, %v813, 0
            %819 = vmatprep.subr.mxu0 0.0
            %820 = vmatpush1.msra.mxu0 %v815
            %821 = vmatprep.subr.mxu0 0.0
            %822 = vmatpush1.msra.mxu0 0.0
            %823 = vmatprep.subr.mxu0 0.0
            %824 = vmatpush1.msra.mxu0 0.0
            %825 = vmatprep.subr.mxu0 0.0
            %826 = vmatpush1.msra.mxu0 0.0
            %827 = vmatprep.subr.mxu0 0.0
            %828 = vmatpush1.msra.mxu0 0.0
            %829 = vmatprep.subr.mxu0 0.0
            %830 = vmatpush1.msra.mxu0 0.0
            %831 = vmatprep.subr.mxu0 0.0
            %832 = vmatpush1.msra.mxu0 0.0
            %833 = vmatprep.subr.mxu0 0.0
            %834 = vmatpush1.msra.mxu0 0.0
            %835 = vmatprep.subr.mxu0 0.0
            %836 = vmatpush1.msra.mxu0 0.0
            %837 = vmatprep.subr.mxu0 0.0
            %838 = vmatpush1.msra.mxu0 0.0
            %839 = vmatprep.subr.mxu0 0.0
            %840 = vmatpush1.msra.mxu0 0.0
            %841 = vmatprep.subr.mxu0 0.0
            %842 = vmatpush1.msra.mxu0 0.0
            %843 = vmatprep.subr.mxu0 0.0
            %844 = vmatpush1.msra.mxu0 0.0
            %845 = vmatprep.subr.mxu0 0.0
            %846 = vmatpush1.msra.mxu0 0.0
            %847 = vmatprep.subr.mxu0 0.0
            %848 = vmatpush1.msra.mxu0 0.0
            %849 = vmatprep.subr.mxu0 0.0
            %850 = vmatpush1.msra.mxu0 0.0
            %851 = vmatprep.subr.mxu0 0.0
            %852 = vmatpush1.msra.mxu0 0.0
            %853 = vmatprep.subr.mxu0 0.0
            %854 = vmatpush1.msra.mxu0 0.0
            %855 = vmatprep.subr.mxu0 0.0
            %856 = vmatpush1.msra.mxu0 0.0
            %857 = vmatprep.subr.mxu0 0.0
            %858 = vmatpush1.msra.mxu0 0.0
            %859 = vmatprep.subr.mxu0 0.0
            %860 = vmatpush1.msra.mxu0 0.0
            %861 = vmatprep.subr.mxu0 0.0
            %862 = vmatpush1.msra.mxu0 0.0
            %863 = vmatprep.subr.mxu0 0.0
            %864 = vmatpush1.msra.mxu0 0.0
            %865 = vmatprep.subr.mxu0 0.0
            %866 = vmatpush1.msra.mxu0 0.0
            %867 = vmatprep.subr.mxu0 0.0
            %868 = vmatpush1.msra.mxu0 0.0
            %869 = vmatprep.subr.mxu0 0.0
            %870 = vmatpush1.msra.mxu0 0.0
            %871 = vmatprep.subr.mxu0 0.0
            %872 = vmatpush1.msra.mxu0 0.0
            %873 = vmatprep.subr.mxu0 0.0
            %874 = vmatpush1.msra.mxu0 0.0
            %875 = vmatprep.subr.mxu0 0.0
            %876 = vmatpush1.msra.mxu0 0.0
            %877 = vmatprep.subr.mxu0 0.0
            %878 = vmatpush1.msra.mxu0 0.0
            %879 = vmatprep.subr.mxu0 0.0
            %880 = vmatpush1.msra.mxu0 0.0
            %881 = vmatprep.subr.mxu0 0.0
            %882 = vmatpush1.msra.mxu0 0.0
            %883 = vmatprep.mubr.f32.mxu0 0.0
            %884 = vmatmul.mubr.f32.gmra.mrb[0].mxu0 %v817
            %v885 = vpop.f32.mrb[0].mxu0
            %v886 = vadd.f32 0.0, %v885
            %v887 = vpop.f32.mrb[0].mxu0
            %888 = vdwg.mxu0
            %v889 = vadd.f32 %v811, %v886
            %890 = vrot.lane.b32.xlu0 %v424, 80
            %v891 = vpop.permute.xlu0 %890
            %892 = vrot.lane.b32.xlu0 %v425, 122
            %v893 = vpop.permute.xlu0 %892
            %v895 = vsel %vm433, %v891, 0
            %897 = vmatprep.subr.mxu0 0.0
            %898 = vmatpush1.msra.mxu0 %v893
            %899 = vmatprep.subr.mxu0 0.0
            %900 = vmatpush1.msra.mxu0 0.0
            %901 = vmatprep.subr.mxu0 0.0
            %902 = vmatpush1.msra.mxu0 0.0
            %903 = vmatprep.subr.mxu0 0.0
            %904 = vmatpush1.msra.mxu0 0.0
            %905 = vmatprep.subr.mxu0 0.0
            %906 = vmatpush1.msra.mxu0 0.0
            %907 = vmatprep.subr.mxu0 0.0
            %908 = vmatpush1.msra.mxu0 0.0
            %909 = vmatprep.subr.mxu0 0.0
            %910 = vmatpush1.msra.mxu0 0.0
            %911 = vmatprep.subr.mxu0 0.0
            %912 = vmatpush1.msra.mxu0 0.0
            %913 = vmatprep.subr.mxu0 0.0
            %914 = vmatpush1.msra.mxu0 0.0
            %915 = vmatprep.subr.mxu0 0.0
            %916 = vmatpush1.msra.mxu0 0.0
            %917 = vmatprep.subr.mxu0 0.0
            %918 = vmatpush1.msra.mxu0 0.0
            %919 = vmatprep.subr.mxu0 0.0
            %920 = vmatpush1.msra.mxu0 0.0
            %921 = vmatprep.subr.mxu0 0.0
            %922 = vmatpush1.msra.mxu0 0.0
            %923 = vmatprep.subr.mxu0 0.0
            %924 = vmatpush1.msra.mxu0 0.0
            %925 = vmatprep.subr.mxu0 0.0
            %926 = vmatpush1.msra.mxu0 0.0
            %927 = vmatprep.subr.mxu0 0.0
            %928 = vmatpush1.msra.mxu0 0.0
            %929 = vmatprep.subr.mxu0 0.0
            %930 = vmatpush1.msra.mxu0 0.0
            %931 = vmatprep.subr.mxu0 0.0
            %932 = vmatpush1.msra.mxu0 0.0
            %933 = vmatprep.subr.mxu0 0.0
            %934 = vmatpush1.msra.mxu0 0.0
            %935 = vmatprep.subr.mxu0 0.0
            %936 = vmatpush1.msra.mxu0 0.0
            %937 = vmatprep.subr.mxu0 0.0
            %938 = vmatpush1.msra.mxu0 0.0
            %939 = vmatprep.subr.mxu0 0.0
            %940 = vmatpush1.msra.mxu0 0.0
            %941 = vmatprep.subr.mxu0 0.0
            %942 = vmatpush1.msra.mxu0 0.0
            %943 = vmatprep.subr.mxu0 0.0
            %944 = vmatpush1.msra.mxu0 0.0
            %945 = vmatprep.subr.mxu0 0.0
            %946 = vmatpush1.msra.mxu0 0.0
            %947 = vmatprep.subr.mxu0 0.0
            %948 = vmatpush1.msra.mxu0 0.0
            %949 = vmatprep.subr.mxu0 0.0
            %950 = vmatpush1.msra.mxu0 0.0
            %951 = vmatprep.subr.mxu0 0.0
            %952 = vmatpush1.msra.mxu0 0.0
            %953 = vmatprep.subr.mxu0 0.0
            %954 = vmatpush1.msra.mxu0 0.0
            %955 = vmatprep.subr.mxu0 0.0
            %956 = vmatpush1.msra.mxu0 0.0
            %957 = vmatprep.subr.mxu0 0.0
            %958 = vmatpush1.msra.mxu0 0.0
            %959 = vmatprep.subr.mxu0 0.0
            %960 = vmatpush1.msra.mxu0 0.0
            %961 = vmatprep.mubr.f32.mxu0 0.0
            %962 = vmatmul.mubr.f32.gmra.mrb[0].mxu0 %v895
            %v963 = vpop.f32.mrb[0].mxu0
            %v964 = vadd.f32 0.0, %v963
            %v965 = vpop.f32.mrb[0].mxu0
            %966 = vdwg.mxu0
            %v967 = vadd.f32 %v889, %v964
            %968 = vrot.lane.b32.xlu0 %v424, 72
            %v969 = vpop.permute.xlu0 %968
            %970 = vrot.lane.b32.xlu0 %v425, 121
            %v971 = vpop.permute.xlu0 %970
            %v973 = vsel %vm433, %v969, 0
            %975 = vmatprep.subr.mxu0 0.0
            %976 = vmatpush1.msra.mxu0 %v971
            %977 = vmatprep.subr.mxu0 0.0
            %978 = vmatpush1.msra.mxu0 0.0
            %979 = vmatprep.subr.mxu0 0.0
            %980 = vmatpush1.msra.mxu0 0.0
            %981 = vmatprep.subr.mxu0 0.0
            %982 = vmatpush1.msra.mxu0 0.0
            %983 = vmatprep.subr.mxu0 0.0
            %984 = vmatpush1.msra.mxu0 0.0
            %985 = vmatprep.subr.mxu0 0.0
            %986 = vmatpush1.msra.mxu0 0.0
            %987 = vmatprep.subr.mxu0 0.0
            %988 = vmatpush1.msra.mxu0 0.0
            %989 = vmatprep.subr.mxu0 0.0
            %990 = vmatpush1.msra.mxu0 0.0
            %991 = vmatprep.subr.mxu0 0.0
            %992 = vmatpush1.msra.mxu0 0.0
            %993 = vmatprep.subr.mxu0 0.0
            %994 = vmatpush1.msra.mxu0 0.0
            %995 = vmatprep.subr.mxu0 0.0
            %996 = vmatpush1.msra.mxu0 0.0
            %997 = vmatprep.subr.mxu0 0.0
            %998 = vmatpush1.msra.mxu0 0.0
            %999 = vmatprep.subr.mxu0 0.0
            %1000 = vmatpush1.msra.mxu0 0.0
            %1001 = vmatprep.subr.mxu0 0.0
            %1002 = vmatpush1.msra.mxu0 0.0
            %1003 = vmatprep.subr.mxu0 0.0
            %1004 = vmatpush1.msra.mxu0 0.0
            %1005 = vmatprep.subr.mxu0 0.0
            %1006 = vmatpush1.msra.mxu0 0.0
            %1007 = vmatprep.subr.mxu0 0.0
            %1008 = vmatpush1.msra.mxu0 0.0
            %1009 = vmatprep.subr.mxu0 0.0
            %1010 = vmatpush1.msra.mxu0 0.0
            %1011 = vmatprep.subr.mxu0 0.0
            %1012 = vmatpush1.msra.mxu0 0.0
            %1013 = vmatprep.subr.mxu0 0.0
            %1014 = vmatpush1.msra.mxu0 0.0
            %1015 = vmatprep.subr.mxu0 0.0
            %1016 = vmatpush1.msra.mxu0 0.0
            %1017 = vmatprep.subr.mxu0 0.0
            %1018 = vmatpush1.msra.mxu0 0.0
            %1019 = vmatprep.subr.mxu0 0.0
            %1020 = vmatpush1.msra.mxu0 0.0
            %1021 = vmatprep.subr.mxu0 0.0
            %1022 = vmatpush1.msra.mxu0 0.0
            %1023 = vmatprep.subr.mxu0 0.0
            %1024 = vmatpush1.msra.mxu0 0.0
            %1025 = vmatprep.subr.mxu0 0.0
            %1026 = vmatpush1.msra.mxu0 0.0
            %1027 = vmatprep.subr.mxu0 0.0
            %1028 = vmatpush1.msra.mxu0 0.0
            %1029 = vmatprep.subr.mxu0 0.0
            %1030 = vmatpush1.msra.mxu0 0.0
            %1031 = vmatprep.subr.mxu0 0.0
            %1032 = vmatpush1.msra.mxu0 0.0
            %1033 = vmatprep.subr.mxu0 0.0
            %1034 = vmatpush1.msra.mxu0 0.0
            %1035 = vmatprep.subr.mxu0 0.0
            %1036 = vmatpush1.msra.mxu0 0.0
            %1037 = vmatprep.subr.mxu0 0.0
            %1038 = vmatpush1.msra.mxu0 0.0
            %1039 = vmatprep.mubr.f32.mxu0 0.0
            %1040 = vmatmul.mubr.f32.gmra.mrb[0].mxu0 %v973
            %v1041 = vpop.f32.mrb[0].mxu0
            %v1042 = vadd.f32 0.0, %v1041
            %v1043 = vpop.f32.mrb[0].mxu0
            %1044 = vdwg.mxu0
            %v1045 = vadd.f32 %v967, %v1042
            %1046 = vrot.lane.b32.xlu0 %v424, 64
            %v1047 = vpop.permute.xlu0 %1046
            %1048 = vrot.lane.b32.xlu0 %v425, 120
            %v1049 = vpop.permute.xlu0 %1048
            %v1051 = vsel %vm433, %v1047, 0
            %1053 = vmatprep.subr.mxu0 0.0
            %1054 = vmatpush1.msra.mxu0 %v1049
            %1055 = vmatprep.subr.mxu0 0.0
            %1056 = vmatpush1.msra.mxu0 0.0
            %1057 = vmatprep.subr.mxu0 0.0
            %1058 = vmatpush1.msra.mxu0 0.0
            %1059 = vmatprep.subr.mxu0 0.0
            %1060 = vmatpush1.msra.mxu0 0.0
            %1061 = vmatprep.subr.mxu0 0.0
            %1062 = vmatpush1.msra.mxu0 0.0
            %1063 = vmatprep.subr.mxu0 0.0
            %1064 = vmatpush1.msra.mxu0 0.0
            %1065 = vmatprep.subr.mxu0 0.0
            %1066 = vmatpush1.msra.mxu0 0.0
            %1067 = vmatprep.subr.mxu0 0.0
            %1068 = vmatpush1.msra.mxu0 0.0
            %1069 = vmatprep.subr.mxu0 0.0
            %1070 = vmatpush1.msra.mxu0 0.0
            %1071 = vmatprep.subr.mxu0 0.0
            %1072 = vmatpush1.msra.mxu0 0.0
            %1073 = vmatprep.subr.mxu0 0.0
            %1074 = vmatpush1.msra.mxu0 0.0
            %1075 = vmatprep.subr.mxu0 0.0
            %1076 = vmatpush1.msra.mxu0 0.0
            %1077 = vmatprep.subr.mxu0 0.0
            %1078 = vmatpush1.msra.mxu0 0.0
            %1079 = vmatprep.subr.mxu0 0.0
            %1080 = vmatpush1.msra.mxu0 0.0
            %1081 = vmatprep.subr.mxu0 0.0
            %1082 = vmatpush1.msra.mxu0 0.0
            %1083 = vmatprep.subr.mxu0 0.0
            %1084 = vmatpush1.msra.mxu0 0.0
            %1085 = vmatprep.subr.mxu0 0.0
            %1086 = vmatpush1.msra.mxu0 0.0
            %1087 = vmatprep.subr.mxu0 0.0
            %1088 = vmatpush1.msra.mxu0 0.0
            %1089 = vmatprep.subr.mxu0 0.0
            %1090 = vmatpush1.msra.mxu0 0.0
            %1091 = vmatprep.subr.mxu0 0.0
            %1092 = vmatpush1.msra.mxu0 0.0
            %1093 = vmatprep.subr.mxu0 0.0
            %1094 = vmatpush1.msra.mxu0 0.0
            %1095 = vmatprep.subr.mxu0 0.0
            %1096 = vmatpush1.msra.mxu0 0.0
            %1097 = vmatprep.subr.mxu0 0.0
            %1098 = vmatpush1.msra.mxu0 0.0
            %1099 = vmatprep.subr.mxu0 0.0
            %1100 = vmatpush1.msra.mxu0 0.0
            %1101 = vmatprep.subr.mxu0 0.0
            %1102 = vmatpush1.msra.mxu0 0.0
            %1103 = vmatprep.subr.mxu0 0.0
            %1104 = vmatpush1.msra.mxu0 0.0
            %1105 = vmatprep.subr.mxu0 0.0
            %1106 = vmatpush1.msra.mxu0 0.0
            %1107 = vmatprep.subr.mxu0 0.0
            %1108 = vmatpush1.msra.mxu0 0.0
            %1109 = vmatprep.subr.mxu0 0.0
            %1110 = vmatpush1.msra.mxu0 0.0
            %1111 = vmatprep.subr.mxu0 0.0
            %1112 = vmatpush1.msra.mxu0 0.0
            %1113 = vmatprep.subr.mxu0 0.0
            %1114 = vmatpush1.msra.mxu0 0.0
            %1115 = vmatprep.subr.mxu0 0.0
            %1116 = vmatpush1.msra.mxu0 0.0
            %1117 = vmatprep.mubr.f32.mxu0 0.0
            %1118 = vmatmul.mubr.f32.gmra.mrb[0].mxu0 %v1051
            %v1119 = vpop.f32.mrb[0].mxu0
            %v1120 = vadd.f32 0.0, %v1119
            %v1121 = vpop.f32.mrb[0].mxu0
            %1122 = vdwg.mxu0
            %v1123 = vadd.f32 %v1045, %v1120
            %v1124 = vld [vmem:[%s3] sm:$0xff]
            %v1125 = vmul.f32 %v1123, 0.001953125
            %v1126 = vsub.f32 %v1124, %v1125
            %vm1127 = vcmask 7168
            %1128 = vst.msk [vmem:[#allocation3] sm:$0xff] %vm1127, %v1126
          $region52: #{tpu_custom_call.1} parent=47 // pred_fallthru
            _
          %v1129 = vld [vmem:[%s209] sm:$0xff]
          %v1130 = vld [vmem:[%s209 + $0x8] sm:$0xff]
          %v1131 = vld [vmem:[%s209 + $0x10] sm:$0xff]
          %1132 = vst [vmem:[#allocation4] sm:$0xff] %v1129
          %1133 = vst [vmem:[#allocation4 + $0x8] sm:$0xff] %v1130
          %1134 = vst [vmem:[#allocation4 + $0x10] sm:$0xff] %v1131
          %1135 = vrot.lane.b32.xlu0 %v1129, 127
          %v1136 = vpop.permute.xlu0 %1135
          %1137 = vrot.lane.b32.xlu0 %v1130, 127
          %v1138 = vpop.permute.xlu0 %1137
          %1139 = vrot.lane.b32.xlu0 %v1131, 127
          %v1140 = vpop.permute.xlu0 %1139
          %v1141 = vlaneseq
          %v1142 = vand.u32 %v1141, 127
          %vm1143 = vcmp.lt.s32.totalorder %v1142, 127
          %v1144 = vsel %vm1143, %v1138, %v1140
          %v1145 = vsel %vm1143, %v1136, %v1138
          %v1146 = vsel %vm1143, %v1140, %v1136
          %1147 = vst [vmem:[#allocation4 + $0x18] sm:$0xff] %v1145
          %1148 = vst [vmem:[#allocation4 + $0x20] sm:$0xff] %v1144
          %1149 = vst [vmem:[#allocation4 + $0x28] sm:$0xff] %v1146
          %1150 = vrot.lane.b32.xlu0 %v1129, 126
          %v1151 = vpop.permute.xlu0 %1150
          %1152 = vrot.lane.b32.xlu0 %v1130, 126
          %v1153 = vpop.permute.xlu0 %1152
          %1154 = vrot.lane.b32.xlu0 %v1131, 126
          %v1155 = vpop.permute.xlu0 %1154
          %vm1156 = vcmp.lt.s32.totalorder %v1142, 126
          %v1157 = vsel %vm1156, %v1153, %v1155
          %v1158 = vsel %vm1156, %v1151, %v1153
          %v1159 = vsel %vm1156, %v1155, %v1151
          %1160 = vst [vmem:[#allocation4 + $0x30] sm:$0xff] %v1158
          %1161 = vst [vmem:[#allocation4 + $0x38] sm:$0xff] %v1157
          %1162 = vst [vmem:[#allocation4 + $0x40] sm:$0xff] %v1159
          %1163 = vrot.lane.b32.xlu0 %v1129, 110
          %v1164 = vpop.permute.xlu0 %1163
          %1165 = vrot.lane.b32.xlu0 %v1130, 110
          %v1166 = vpop.permute.xlu0 %1165
          %1167 = vrot.lane.b32.xlu0 %v1131, 110
          %v1168 = vpop.permute.xlu0 %1167
          %vm1169 = vcmp.lt.s32.totalorder %v1142, 110
          %v1170 = vsel %vm1169, %v1166, %v1168
          %v1171 = vsel %vm1169, %v1164, %v1166
          %v1172 = vsel %vm1169, %v1168, %v1164
          %1173 = vst [vmem:[#allocation4 + $0x48] sm:$0xff] %v1171
          %1174 = vst [vmem:[#allocation4 + $0x50] sm:$0xff] %v1170
          %1175 = vst [vmem:[#allocation4 + $0x58] sm:$0xff] %v1172
          %1176 = vrot.lane.b32.xlu0 %v1129, 109
          %v1177 = vpop.permute.xlu0 %1176
          %1178 = vrot.lane.b32.xlu0 %v1130, 109
          %v1179 = vpop.permute.xlu0 %1178
          %1180 = vrot.lane.b32.xlu0 %v1131, 109
          %v1181 = vpop.permute.xlu0 %1180
          %vm1182 = vcmp.lt.s32.totalorder %v1142, 109
          %v1183 = vsel %vm1182, %v1179, %v1181
          %v1184 = vsel %vm1182, %v1177, %v1179
          %v1185 = vsel %vm1182, %v1181, %v1177
          %1186 = vst [vmem:[#allocation4 + $0x60] sm:$0xff] %v1184
          %1187 = vst [vmem:[#allocation4 + $0x68] sm:$0xff] %v1183
          %1188 = vst [vmem:[#allocation4 + $0x70] sm:$0xff] %v1185
          %1189 = vrot.lane.b32.xlu0 %v1129, 108
          %v1190 = vpop.permute.xlu0 %1189
          %1191 = vrot.lane.b32.xlu0 %v1130, 108
          %v1192 = vpop.permute.xlu0 %1191
          %1193 = vrot.lane.b32.xlu0 %v1131, 108
          %v1194 = vpop.permute.xlu0 %1193
          %vm1195 = vcmp.lt.s32.totalorder %v1142, 108
          %v1196 = vsel %vm1195, %v1192, %v1194
          %v1197 = vsel %vm1195, %v1190, %v1192
          %v1198 = vsel %vm1195, %v1194, %v1190
          %1199 = vst [vmem:[#allocation4 + $0x78] sm:$0xff] %v1197
          %1200 = vst [vmem:[#allocation4 + $0x80] sm:$0xff] %v1196
          %1201 = vst [vmem:[#allocation4 + $0x88] sm:$0xff] %v1198
          %1202 = vrot.lane.b32.xlu0 %v1129, 92
          %v1203 = vpop.permute.xlu0 %1202
          %1204 = vrot.lane.b32.xlu0 %v1130, 92
          %v1205 = vpop.permute.xlu0 %1204
          %1206 = vrot.lane.b32.xlu0 %v1131, 92
          %v1207 = vpop.permute.xlu0 %1206
          %vm1208 = vcmp.lt.s32.totalorder %v1142, 92
          %v1209 = vsel %vm1208, %v1205, %v1207
          %v1210 = vsel %vm1208, %v1203, %v1205
          %v1211 = vsel %vm1208, %v1207, %v1203
          %1212 = vst [vmem:[#allocation4 + $0x90] sm:$0xff] %v1210
          %1213 = vst [vmem:[#allocation4 + $0x98] sm:$0xff] %v1209
          %1214 = vst [vmem:[#allocation4 + $0xa0] sm:$0xff] %v1211
          %1215 = vrot.lane.b32.xlu0 %v1129, 91
          %v1216 = vpop.permute.xlu0 %1215
          %1217 = vrot.lane.b32.xlu0 %v1130, 91
          %v1218 = vpop.permute.xlu0 %1217
          %1219 = vrot.lane.b32.xlu0 %v1131, 91
          %v1220 = vpop.permute.xlu0 %1219
          %vm1221 = vcmp.lt.s32.totalorder %v1142, 91
          %v1222 = vsel %vm1221, %v1218, %v1220
          %v1223 = vsel %vm1221, %v1216, %v1218
          %v1224 = vsel %vm1221, %v1220, %v1216
          %1225 = vst [vmem:[#allocation4 + $0xa8] sm:$0xff] %v1223
          %1226 = vst [vmem:[#allocation4 + $0xb0] sm:$0xff] %v1222
          %1227 = vst [vmem:[#allocation4 + $0xb8] sm:$0xff] %v1224
          %1228 = vrot.lane.b32.xlu0 %v1129, 90
          %v1229 = vpop.permute.xlu0 %1228
          %1230 = vrot.lane.b32.xlu0 %v1130, 90
          %v1231 = vpop.permute.xlu0 %1230
          %1232 = vrot.lane.b32.xlu0 %v1131, 90
          %v1233 = vpop.permute.xlu0 %1232
          %vm1234 = vcmp.lt.s32.totalorder %v1142, 90
          %v1235 = vsel %vm1234, %v1231, %v1233
          %v1236 = vsel %vm1234, %v1229, %v1231
          %v1237 = vsel %vm1234, %v1233, %v1229
          %1238 = vst [vmem:[#allocation4 + $0xc0] sm:$0xff] %v1236
          %1239 = vst [vmem:[#allocation4 + $0xc8] sm:$0xff] %v1235
          %1240 = vst [vmem:[#allocation4 + $0xd0] sm:$0xff] %v1237
          %v1241 = vld [vmem:[%s1] sm:$0xff]
          %v1242 = vld [vmem:[#allocation4] sm:$0xff]
          %v1243 = vld [vmem:[#allocation4 + $0x8] sm:$0xff]
          %v1244 = vld [vmem:[#allocation4 + $0x10] sm:$0xff]
          %v1245 = vld [vmem:[#allocation4 + $0x18] sm:$0xff]
          %v1246 = vld [vmem:[#allocation4 + $0x20] sm:$0xff]
          %v1247 = vld [vmem:[#allocation4 + $0x28] sm:$0xff]
          %v1248 = vld [vmem:[#allocation4 + $0x30] sm:$0xff]
          %v1249 = vld [vmem:[#allocation4 + $0x38] sm:$0xff]
          %v1250 = vld [vmem:[#allocation4 + $0x40] sm:$0xff]
          %v1251 = vld [vmem:[#allocation4 + $0x48] sm:$0xff]
          %v1252 = vld [vmem:[#allocation4 + $0x50] sm:$0xff]
          %v1253 = vld [vmem:[#allocation4 + $0x58] sm:$0xff]
          %v1254 = vld [vmem:[#allocation4 + $0x60] sm:$0xff]
          %v1255 = vld [vmem:[#allocation4 + $0x68] sm:$0xff]
          %v1256 = vld [vmem:[#allocation4 + $0x70] sm:$0xff]
          %v1257 = vld [vmem:[#allocation4 + $0x78] sm:$0xff]
          %v1258 = vld [vmem:[#allocation4 + $0x80] sm:$0xff]
          %v1259 = vld [vmem:[#allocation4 + $0x88] sm:$0xff]
          %v1260 = vld [vmem:[#allocation4 + $0x90] sm:$0xff]
          %v1261 = vld [vmem:[#allocation4 + $0x98] sm:$0xff]
          %v1262 = vld [vmem:[#allocation4 + $0xa0] sm:$0xff]
          %v1263 = vld [vmem:[#allocation4 + $0xa8] sm:$0xff]
          %v1264 = vld [vmem:[#allocation4 + $0xb0] sm:$0xff]
          %v1265 = vld [vmem:[#allocation4 + $0xb8] sm:$0xff]
          %v1266 = vld [vmem:[#allocation4 + $0xc0] sm:$0xff]
          %v1267 = vld [vmem:[#allocation4 + $0xc8] sm:$0xff]
          %v1268 = vld [vmem:[#allocation4 + $0xd0] sm:$0xff]
          %v1269 = vld [vmem:[#allocation3] sm:$0xff]
          %1271 = vset.pattern.permute.xlu0 0
          %1272 = vperm.xlu0 %1271, %v1269
          %v1273 = vpop.permute.xlu0 %1272
          %vm1275 = vcmask 588800
          %v1277 = vsel %vm1275, %v1241, 0
          %1279 = vmatprep.subr.mxu0 %v1243
          %1280 = vmatpush1.msra.mxu0 %v1242
          %1281 = vmatprep.subr.mxu0 %v1246
          %1282 = vmatpush1.msra.mxu0 %v1245
          %1283 = vmatprep.subr.mxu0 %v1249
          %1284 = vmatpush1.msra.mxu0 %v1248
          %1285 = vmatprep.subr.mxu0 %v1252
          %1286 = vmatpush1.msra.mxu0 %v1251
          %1287 = vmatprep.subr.mxu0 %v1255
          %1288 = vmatpush1.msra.mxu0 %v1254
          %1289 = vmatprep.subr.mxu0 %v1258
          %1290 = vmatpush1.msra.mxu0 %v1257
          %1291 = vmatprep.subr.mxu0 %v1261
          %1292 = vmatpush1.msra.mxu0 %v1260
          %1293 = vmatprep.subr.mxu0 %v1264
          %1294 = vmatpush1.msra.mxu0 %v1263
          %1295 = vmatprep.subr.mxu0 %v1267
          %1296 = vmatpush1.msra.mxu0 %v1266
          %1297 = vmatprep.subr.mxu0 0.0
          %1298 = vmatpush1.msra.mxu0 0.0
          %1299 = vmatprep.subr.mxu0 0.0
          %1300 = vmatpush1.msra.mxu0 0.0
          %1301 = vmatprep.subr.mxu0 0.0
          %1302 = vmatpush1.msra.mxu0 0.0
          %1303 = vmatprep.subr.mxu0 0.0
          %1304 = vmatpush1.msra.mxu0 0.0
          %1305 = vmatprep.subr.mxu0 0.0
          %1306 = vmatpush1.msra.mxu0 0.0
          %1307 = vmatprep.subr.mxu0 0.0
          %1308 = vmatpush1.msra.mxu0 0.0
          %1309 = vmatprep.subr.mxu0 0.0
          %1310 = vmatpush1.msra.mxu0 0.0
          %1311 = vmatprep.subr.mxu0 0.0
          %1312 = vmatpush1.msra.mxu0 0.0
          %1313 = vmatprep.subr.mxu0 0.0
          %1314 = vmatpush1.msra.mxu0 0.0
          %1315 = vmatprep.subr.mxu0 0.0
          %1316 = vmatpush1.msra.mxu0 0.0
          %1317 = vmatprep.subr.mxu0 0.0
          %1318 = vmatpush1.msra.mxu0 0.0
          %1319 = vmatprep.subr.mxu0 0.0
          %1320 = vmatpush1.msra.mxu0 0.0
          %1321 = vmatprep.subr.mxu0 0.0
          %1322 = vmatpush1.msra.mxu0 0.0
          %1323 = vmatprep.subr.mxu0 0.0
          %1324 = vmatpush1.msra.mxu0 0.0
          %1325 = vmatprep.subr.mxu0 0.0
          %1326 = vmatpush1.msra.mxu0 0.0
          %1327 = vmatprep.subr.mxu0 0.0
          %1328 = vmatpush1.msra.mxu0 0.0
          %1329 = vmatprep.subr.mxu0 0.0
          %1330 = vmatpush1.msra.mxu0 0.0
          %1331 = vmatprep.subr.mxu0 0.0
          %1332 = vmatpush1.msra.mxu0 0.0
          %1333 = vmatprep.subr.mxu0 0.0
          %1334 = vmatpush1.msra.mxu0 0.0
          %1335 = vmatprep.subr.mxu0 0.0
          %1336 = vmatpush1.msra.mxu0 0.0
          %1337 = vmatprep.subr.mxu0 0.0
          %1338 = vmatpush1.msra.mxu0 0.0
          %1339 = vmatprep.subr.mxu0 0.0
          %1340 = vmatpush1.msra.mxu0 0.0
          %1341 = vmatprep.subr.mxu0 0.0
          %1342 = vmatpush1.msra.mxu0 0.0
          %1343 = vmatprep.mubr.f32.mxu0 0.0
          %1344 = vmatmul.mubr.f32.gmra.mrb[0].mxu0 %v1277
          %v1345 = vpop.f32.mrb[0].mxu0
          %v1346 = vadd.f32 %v1273, %v1345
          %v1347 = vpop.f32.mrb[0].mxu0
          %v1348 = vadd.f32 %v1273, %v1347
          %1349 = vdwg.mxu0
          %1350 = vmatprep.subr.mxu0 0.0
          %1351 = vmatpush1.msra.mxu0 %v1244
          %1352 = vmatprep.subr.mxu0 0.0
          %1353 = vmatpush1.msra.mxu0 %v1247
          %1354 = vmatprep.subr.mxu0 0.0
          %1355 = vmatpush1.msra.mxu0 %v1250
          %1356 = vmatprep.subr.mxu0 0.0
          %1357 = vmatpush1.msra.mxu0 %v1253
          %1358 = vmatprep.subr.mxu0 0.0
          %1359 = vmatpush1.msra.mxu0 %v1256
          %1360 = vmatprep.subr.mxu0 0.0
          %1361 = vmatpush1.msra.mxu0 %v1259
          %1362 = vmatprep.subr.mxu0 0.0
          %1363 = vmatpush1.msra.mxu0 %v1262
          %1364 = vmatprep.subr.mxu0 0.0
          %1365 = vmatpush1.msra.mxu0 %v1265
          %1366 = vmatprep.subr.mxu0 0.0
          %1367 = vmatpush1.msra.mxu0 %v1268
          %1368 = vmatprep.subr.mxu0 0.0
          %1369 = vmatpush1.msra.mxu0 0.0
          %1370 = vmatprep.subr.mxu0 0.0
          %1371 = vmatpush1.msra.mxu0 0.0
          %1372 = vmatprep.subr.mxu0 0.0
          %1373 = vmatpush1.msra.mxu0 0.0
          %1374 = vmatprep.subr.mxu0 0.0
          %1375 = vmatpush1.msra.mxu0 0.0
          %1376 = vmatprep.subr.mxu0 0.0
          %1377 = vmatpush1.msra.mxu0 0.0
          %1378 = vmatprep.subr.mxu0 0.0
          %1379 = vmatpush1.msra.mxu0 0.0
          %1380 = vmatprep.subr.mxu0 0.0
          %1381 = vmatpush1.msra.mxu0 0.0
          %1382 = vmatprep.subr.mxu0 0.0
          %1383 = vmatpush1.msra.mxu0 0.0
          %1384 = vmatprep.subr.mxu0 0.0
          %1385 = vmatpush1.msra.mxu0 0.0
          %1386 = vmatprep.subr.mxu0 0.0
          %1387 = vmatpush1.msra.mxu0 0.0
          %1388 = vmatprep.subr.mxu0 0.0
          %1389 = vmatpush1.msra.mxu0 0.0
          %1390 = vmatprep.subr.mxu0 0.0
          %1391 = vmatpush1.msra.mxu0 0.0
          %1392 = vmatprep.subr.mxu0 0.0
          %1393 = vmatpush1.msra.mxu0 0.0
          %1394 = vmatprep.subr.mxu0 0.0
          %1395 = vmatpush1.msra.mxu0 0.0
          %1396 = vmatprep.subr.mxu0 0.0
          %1397 = vmatpush1.msra.mxu0 0.0
          %1398 = vmatprep.subr.mxu0 0.0
          %1399 = vmatpush1.msra.mxu0 0.0
          %1400 = vmatprep.subr.mxu0 0.0
          %1401 = vmatpush1.msra.mxu0 0.0
          %1402 = vmatprep.subr.mxu0 0.0
          %1403 = vmatpush1.msra.mxu0 0.0
          %1404 = vmatprep.subr.mxu0 0.0
          %1405 = vmatpush1.msra.mxu0 0.0
          %1406 = vmatprep.subr.mxu0 0.0
          %1407 = vmatpush1.msra.mxu0 0.0
          %1408 = vmatprep.subr.mxu0 0.0
          %1409 = vmatpush1.msra.mxu0 0.0
          %1410 = vmatprep.subr.mxu0 0.0
          %1411 = vmatpush1.msra.mxu0 0.0
          %1412 = vmatprep.subr.mxu0 0.0
          %1413 = vmatpush1.msra.mxu0 0.0
          %1414 = vmatprep.mubr.f32.mxu0 0.0
          %1415 = vmatmul.mubr.f32.gmra.mrb[0].mxu0 %v1277
          %v1416 = vpop.f32.mrb[0].mxu0
          %v1417 = vadd.f32 %v1273, %v1416
          %v1418 = vpop.f32.mrb[0].mxu0
          %1419 = vdwg.mxu0
          %1420 = vst [vmem:[%s204] sm:$0xff] %v1346
          %1421 = vst [vmem:[%s204 + $0x8] sm:$0xff] %v1348
          %1422 = vst [vmem:[%s204 + $0x10] sm:$0xff] %v1417
        $region48: #{tpu_custom_call.1} parent=35 // pred_fallthru
          _
        %s1423 = sand.u32 %s129, 1
        %s1424 = scalar_lea.sflag [#allocation6], %s1423
        %s1425 = sand.u32 %s129, 1
        %s1426 = smul.addr %s1425, 24
        %s1427 = scalar_lea.vmem [#allocation5], %s1426
        // Predicated region
        $region53: #{tpu_custom_call.1} parent=35 // pred_check
          %p1428 = pneg %p139
        $region54: #{tpu_custom_call.1} parent=35 // pred_check_branch
          %1430 = sbr.rel (%p1428) target = $region56
        $region55: #{tpu_custom_call.1} parent=35 // pred_region
          %s1431 = smul.u32 %s23, %s22
          %s1433 = ssub.s32 384, 384
          %1434 = vsyncadd %s1424, %s1433
          %s1435 = smul.addr %s1431, 3
          %s1436 = smul.addr %s1435, 128
          %s1437 = scalar_lea.hbm %s4, %s1436
          %s1439 = sshll.u32 %s1427, 4
          %s1440 = int_to_ptr.vmem [resolvable:$true] %s1439
          %1442 = dma.vmem_to_hbm [thread:$0]  %s1440, 384, %s1437, %s1424
        $region56: #{tpu_custom_call.1} parent=35 // pred_fallthru
          _
      $region36: #{tpu_custom_call.1} parent=5 // pred_fallthru
        _
      %p1443 = scmp.le.s32.totalorder 2, %s13
      // Predicated region
      $region57: #{tpu_custom_call.1} parent=5 // pred_check
        %p1444 = pneg %p1443
      $region58: #{tpu_custom_call.1} parent=5 // pred_check_branch
        %1446 = sbr.rel (%p1444) target = $region60
      $region59: #{tpu_custom_call.1} parent=5 // pred_region
        %s1447 = ssub.s32 %s13, 2
        // Predicated region
        $region61: #{tpu_custom_call.1} parent=59 // pred_check
          %p1448 = pneg %p145
        $region62: #{tpu_custom_call.1} parent=59 // pred_check_branch
          %1450 = sbr.rel (%p1448) target = $region64
        $region63: #{tpu_custom_call.1} parent=59 // pred_region
          %s1451 = sand.u32 %s130, 1
          %s1452 = scalar_lea.sflag [#allocation6], %s1451
          %s1453 = sand.u32 %s130, 1
          %s1454 = smul.addr %s1453, 24
          %s1455 = scalar_lea.vmem [#allocation5], %s1454
          %1456 = dma.done %s1452, 384
        $region64: #{tpu_custom_call.1} parent=59 // pred_fallthru
          _
      $region60: #{tpu_custom_call.1} parent=5 // pred_fallthru
        _
    $region6: #{tpu_custom_call.1} parent=1 // loop_footer
      %s17 = sadd.s32 1, %s13
    $region7: #{tpu_custom_call.1} parent=1 // loop_footer_branch
      %12 = sbr.rel target = $region3
    $region8: #{tpu_custom_call.1} parent=1 // loop_exit
      _
    %1457 = vsyncpa [#allocation6], 1
    %s1458 = scalar_lea.sflag [#allocation6], 1
    %1459 = vsyncpa %s1458, 1

</llo_original>
